<compile_context>
chip_gen: v6e
topology: v6e:2x2x1
jax: 0.10.0
libtpu: 0.0.40
codegen_flags: <defaults>
</compile_context>

<pallas_src>
import math

import jax
import jax.numpy as jnp
from jax.experimental import pallas as pl
from jax.experimental.pallas import tpu as pltpu

BN_EPS = 1e-5


def autopad(k, p=None, d=1):
    if d > 1:
        k = d * (k - 1) + 1 if isinstance(k, int) else [d * (x - 1) + 1 for x in k]
    if p is None:
        p = k // 2 if isinstance(k, int) else [x // 2 for x in k]
    return p


def _round_up(x, m):
    return (x + m - 1) // m * m


def conv_forward(x_nchw, w_hwio, gamma, beta, stride=1, padding=None,
                 dilation=1, tile_rows=1024):
    """Equivalent of Conv.forward(x): SiLU(BN(conv(x))) in NCHW."""
    assert stride == 1 and dilation == 1, "only stride=1, dilation=1, groups=1 supported"

    N, C1, H, W = x_nchw.shape
    KH, KW, wc1, C2 = w_hwio.shape
    assert wc1 == C1
    p = autopad(KH, padding, dilation)

    OH = H + 2 * p - KH + 1
    OW = W + 2 * p - KW + 1

    KU = KH * KW * C1                 # folded contraction depth (taps x C1)
    K_pad = _round_up(KU, 128)        # lane-dense / MXU-friendly contraction
    C2P = _round_up(C2, 128)          # lane-dense output channels
    M = N * OH * OW                   # true output pixels == BN batch size
    TM = min(_round_up(M, 8), _round_up(tile_rows, 8))
    M_pad = _round_up(M, TM)
    T = M_pad // TM                   # row-tiles (grid steps)

    # ---- host glue: K-folded, lane-dense lhs (layout only, done by XLA) ----
    x = jnp.transpose(x_nchw, (0, 2, 3, 1))                       # NHWC
    xp = jnp.pad(x, ((0, 0), (p, p), (p, p), (0, 0)))
    taps = [xp[:, kh:kh + OH, kw:kw + OW, :]
            for kh in range(KH) for kw in range(KW)]
    a = jnp.concatenate(taps, axis=-1).reshape(M, KU)             # (M, KH*KW*C1)
    a = jnp.pad(a, ((0, M_pad - M), (0, K_pad - KU))).astype(jnp.bfloat16)

    wk = w_hwio.reshape(KU, C2)                                   # matches (kh,kw,c1) order
    wk = jnp.pad(wk, ((0, K_pad - KU), (0, C2P - C2))).astype(jnp.bfloat16)

    # ---- call 1: conv + per-tile BN partial sums ----
    def conv_stats_kernel(a_ref, w_ref, y_ref, s1_ref, s2_ref):
        # Single MXU matmul per tile: bf16 operands, f32 accumulation.
        y = jnp.dot(a_ref[...], w_ref[...], preferred_element_type=jnp.float32)
        y_ref[...] = y
        # Zero-padded rows / K columns / channels contribute exactly 0, so no
        # validity masking is needed for the batch statistics.
        s1 = jnp.sum(y, axis=0, keepdims=True)          # (1, C2P)
        s2 = jnp.sum(y * y, axis=0, keepdims=True)
        s1_ref[...] = jnp.broadcast_to(s1, (1, 8, C2P))
        s2_ref[...] = jnp.broadcast_to(s2, (1, 8, C2P))

    y, s1p, s2p = pl.pallas_call(
        conv_stats_kernel,
        out_shape=(jax.ShapeDtypeStruct((M_pad, C2P), jnp.float32),
                   jax.ShapeDtypeStruct((T, 8, C2P), jnp.float32),
                   jax.ShapeDtypeStruct((T, 8, C2P), jnp.float32)),
        grid_spec=pltpu.PrefetchScalarGridSpec(
            num_scalar_prefetch=0,
            grid=(T,),
            in_specs=[
                pl.BlockSpec((TM, K_pad), lambda i: (i, 0)),       # lhs tile
                pl.BlockSpec((K_pad, C2P), lambda i: (0, 0)),      # resident weights (tiny)
            ],
            out_specs=(
                pl.BlockSpec((TM, C2P), lambda i: (i, 0)),         # conv output tile
                pl.BlockSpec((1, 8, C2P), lambda i: (i, 0, 0)),    # per-tile s1
                pl.BlockSpec((1, 8, C2P), lambda i: (i, 0, 0)),    # per-tile s2
            ),
        ),
        compiler_params=pltpu.CompilerParams(
            dimension_semantics=("parallel",)),
        cost_estimate=pl.CostEstimate(
            flops=2 * M_pad * K_pad * C2P,
            transcendentals=0,
            bytes_accessed=a.size * 2 + wk.size * 2 + M_pad * C2P * 4),
    )(a, wk)

    # ---- tiny host combine: fold batch stats + BN affine into scale/shift ----
    inv_m = 1.0 / float(M)
    s1 = s1p[:, 0, :].sum(axis=0)
    s2 = s2p[:, 0, :].sum(axis=0)
    mean = s1 * inv_m
    var = jnp.maximum(s2 * inv_m - mean * mean, 0.0)
    gamma_p = jnp.pad(gamma.astype(jnp.float32), (0, C2P - C2))
    beta_p = jnp.pad(beta.astype(jnp.float32), (0, C2P - C2))
    scale_v = gamma_p * jax.lax.rsqrt(var + BN_EPS)
    shift_v = beta_p - mean * scale_v
    scale = scale_v.reshape(1, C2P)
    shift = shift_v.reshape(1, C2P)

    # ---- call 2: BN apply + SiLU (pure elementwise, lane-dense) ----
    def bn_silu_kernel(y_ref, scale_ref, shift_ref, o_ref):
        z = y_ref[...] * scale_ref[...] + shift_ref[...]
        o_ref[...] = z * jax.nn.sigmoid(z)

    out2 = pl.pallas_call(
        bn_silu_kernel,
        out_shape=jax.ShapeDtypeStruct((M_pad, C2P), jnp.float32),
        grid_spec=pltpu.PrefetchScalarGridSpec(
            num_scalar_prefetch=0,
            grid=(T,),
            in_specs=[
                pl.BlockSpec((TM, C2P), lambda i: (i, 0)),
                pl.BlockSpec((1, C2P), lambda i: (0, 0)),
                pl.BlockSpec((1, C2P), lambda i: (0, 0)),
            ],
            out_specs=pl.BlockSpec((TM, C2P), lambda i: (i, 0)),
        ),
        compiler_params=pltpu.CompilerParams(
            dimension_semantics=("parallel",)),
        cost_estimate=pl.CostEstimate(
            flops=3 * M_pad * C2P,
            transcendentals=M_pad * C2P,
            bytes_accessed=2 * M_pad * C2P * 4),
    )(y, scale, shift)

    # Drop padded rows / channels; back to NCHW.
    out = out2[:M].reshape(N, OH, OW, C2P)[..., :C2]
    return jnp.transpose(out, (0, 3, 1, 2))


def _reference(x_nchw, w_hwio, gamma, beta, stride=1, padding=None, dilation=1):
    """Pure-JAX reference (lax conv + batch-stats BN + SiLU)."""
    p = autopad(w_hwio.shape[0], padding, dilation)
    y = jax.lax.conv_general_dilated(
        x_nchw, w_hwio, (stride, stride), [(p, p), (p, p)],
        rhs_dilation=(dilation, dilation),
        dimension_numbers=("NCHW", "HWIO", "NCHW"),
        precision=jax.lax.Precision.HIGHEST)
    mean = jnp.mean(y, axis=(0, 2, 3), keepdims=True)
    var = jnp.mean((y - mean) ** 2, axis=(0, 2, 3), keepdims=True)
    z = (y - mean) * jax.lax.rsqrt(var + BN_EPS)
    z = z * gamma.reshape(1, -1, 1, 1) + beta.reshape(1, -1, 1, 1)
    return z * jax.nn.sigmoid(z)


if __name__ == "__main__":
    # Shapes consistent with the module's test: x = rand(1, 8, 25, 25),
    # Conv(c1=8, c2=16, k=3, s=1).
    N, C1, H, W = 1, 8, 25, 25
    C2, K, S = 16, 3, 1

    key = jax.random.PRNGKey(0)
    kx, kw = jax.random.split(key)
    x = jax.random.uniform(kx, (N, C1, H, W), dtype=jnp.float32)
    bound = 1.0 / math.sqrt(C1 * K * K)
    w = jax.random.uniform(kw, (K, K, C1, C2), dtype=jnp.float32,
                           minval=-bound, maxval=bound)
    gamma = jnp.ones((C2,), jnp.float32)   # BatchNorm2d default init
    beta = jnp.zeros((C2,), jnp.float32)

    fwd = jax.jit(lambda x, w, g, b: conv_forward(x, w, g, b, stride=S))
    out = jax.block_until_ready(fwd(x, w, gamma, beta))

    # Reference uses the same bf16-quantized operands the kernel feeds the MXU,
    # so the comparison isolates kernel math (f32 accumulation throughout).
    xq = x.astype(jnp.bfloat16).astype(jnp.float32)
    wq = w.astype(jnp.bfloat16).astype(jnp.float32)
    ref = _reference(xq, wq, gamma, beta, stride=S)

    assert out.shape == (N, C2, H, W), out.shape
    max_err = float(jnp.max(jnp.abs(out - ref)))
    assert jnp.allclose(out, ref, rtol=1e-3, atol=1e-3), max_err

    print("KERNEL_OK")
</pallas_src>

<mosaic_0001>
module attributes {stable_mosaic.version = 11 : i64} {
  func.func @conv_stats_kernel(%arg0: i32, %arg1: memref<632x128xbf16, #tpu.memory_space<vmem>>, %arg2: memref<128x128xbf16, #tpu.memory_space<vmem>>, %arg3: memref<632x128xf32, #tpu.memory_space<vmem>>, %arg4: memref<1x8x128xf32, #tpu.memory_space<vmem>>, %arg5: memref<1x8x128xf32, #tpu.memory_space<vmem>>) attributes {dimension_semantics = [#tpu.dimension_semantics<parallel>], iteration_bounds = array<i64: 1>, scalar_prefetch = 0 : i64, scratch_operands = 0 : i64, tpu.core_type = #tpu.core_type<tc>, window_params = [{transform_indices = @transform_0, window_bounds = array<i64: 632, 128>}, {pipeline_mode = #tpu.pipeline_mode<synchronous>, transform_indices = @transform_1, window_bounds = array<i64: 128, 128>}, {transform_indices = @transform_2, window_bounds = array<i64: 632, 128>}, {transform_indices = @transform_3, window_bounds = array<i64: 1, 8, 128>}, {transform_indices = @transform_4, window_bounds = array<i64: 1, 8, 128>}]} {
    %c0 = arith.constant 0 : index
    %c0_0 = arith.constant 0 : index
    %0 = vector.load %arg1[%c0, %c0_0] : memref<632x128xbf16, #tpu.memory_space<vmem>>, vector<632x128xbf16>
    %c0_1 = arith.constant 0 : index
    %c0_2 = arith.constant 0 : index
    %1 = vector.load %arg2[%c0_1, %c0_2] : memref<128x128xbf16, #tpu.memory_space<vmem>>, vector<128x128xbf16>
    %cst = arith.constant dense<0.000000e+00> : vector<632x128xf32>
    %2 = tpu.matmul %0, %1, %cst {dimension_numbers = #tpu.dot_dimension_numbers<[1], [0], [0], [1], [0, 0, 1, 1], [], []>} : vector<632x128xbf16>, vector<128x128xbf16>, vector<632x128xf32> -> vector<632x128xf32>
    %c0_3 = arith.constant 0 : index
    %c0_4 = arith.constant 0 : index
    %3 = vector.load %arg3[%c0_3, %c0_4] : memref<632x128xf32, #tpu.memory_space<vmem>>, vector<632x128xf32>
    tpu.vector_store %arg3[%c0_3, %c0_4], %2 {strides = array<i32>} : memref<632x128xf32, #tpu.memory_space<vmem>>, vector<632x128xf32>,
    %cst_5 = arith.constant dense<0.000000e+00> : vector<128xf32>
    %4 = vector.multi_reduction <add>, %2, %cst_5 [0] : vector<632x128xf32> to vector<128xf32>
    %5 = vector.shape_cast %4 : vector<128xf32> to vector<1x128xf32>
    %6 = arith.mulf %2, %2 : vector<632x128xf32>
    %cst_6 = arith.constant dense<0.000000e+00> : vector<128xf32>
    %7 = vector.multi_reduction <add>, %6, %cst_6 [0] : vector<632x128xf32> to vector<128xf32>
    %8 = vector.shape_cast %7 : vector<128xf32> to vector<1x128xf32>
    %9 = vector.shape_cast %5 : vector<1x128xf32> to vector<1x1x128xf32>
    %10 = vector.broadcast %9 : vector<1x1x128xf32> to vector<1x8x128xf32>
    %c0_7 = arith.constant 0 : index
    %c0_8 = arith.constant 0 : index
    %c0_9 = arith.constant 0 : index
    %11 = vector.load %arg4[%c0_7, %c0_8, %c0_9] : memref<1x8x128xf32, #tpu.memory_space<vmem>>, vector<1x8x128xf32>
    tpu.vector_store %arg4[%c0_7, %c0_8, %c0_9], %10 {strides = array<i32>} : memref<1x8x128xf32, #tpu.memory_space<vmem>>, vector<1x8x128xf32>,
    %12 = vector.shape_cast %8 : vector<1x128xf32> to vector<1x1x128xf32>
    %13 = vector.broadcast %12 : vector<1x1x128xf32> to vector<1x8x128xf32>
    %c0_10 = arith.constant 0 : index
    %c0_11 = arith.constant 0 : index
    %c0_12 = arith.constant 0 : index
    %14 = vector.load %arg5[%c0_10, %c0_11, %c0_12] : memref<1x8x128xf32, #tpu.memory_space<vmem>>, vector<1x8x128xf32>
    tpu.vector_store %arg5[%c0_10, %c0_11, %c0_12], %13 {strides = array<i32>} : memref<1x8x128xf32, #tpu.memory_space<vmem>>, vector<1x8x128xf32>,
    return
  }
  func.func @transform_0(%arg0: i32) -> (i32, i32) {
    %c0_i32 = arith.constant 0 : i32
    %c0_i32_0 = arith.constant 0 : i32
    return %arg0, %c0_i32 : i32, i32
  }
  func.func @transform_1(%arg0: i32) -> (i32, i32) {
    %c0_i32 = arith.constant 0 : i32
    %c0_i32_0 = arith.constant 0 : i32
    %c0_i32_1 = arith.constant 0 : i32
    return %c0_i32, %c0_i32_0 : i32, i32
  }
  func.func @transform_2(%arg0: i32) -> (i32, i32) {
    %c0_i32 = arith.constant 0 : i32
    %c0_i32_0 = arith.constant 0 : i32
    return %arg0, %c0_i32 : i32, i32
  }
  func.func @transform_3(%arg0: i32) -> (i32, i32, i32) {
    %c0_i32 = arith.constant 0 : i32
    %c0_i32_0 = arith.constant 0 : i32
    %c0_i32_1 = arith.constant 0 : i32
    return %arg0, %c0_i32, %c0_i32_0 : i32, i32, i32
  }
  func.func @transform_4(%arg0: i32) -> (i32, i32, i32) {
    %c0_i32 = arith.constant 0 : i32
    %c0_i32_0 = arith.constant 0 : i32
    %c0_i32_1 = arith.constant 0 : i32
    return %arg0, %c0_i32, %c0_i32_0 : i32, i32, i32
  }
}

module attributes {stable_mosaic.version = 11 : i64} {
  func.func @bn_silu_kernel(%arg0: i32, %arg1: memref<632x128xf32, #tpu.memory_space<vmem>>, %arg2: memref<1x128xf32, #tpu.memory_space<vmem>>, %arg3: memref<1x128xf32, #tpu.memory_space<vmem>>, %arg4: memref<632x128xf32, #tpu.memory_space<vmem>>) attributes {dimension_semantics = [#tpu.dimension_semantics<parallel>], iteration_bounds = array<i64: 1>, scalar_prefetch = 0 : i64, scratch_operands = 0 : i64, tpu.core_type = #tpu.core_type<tc>, window_params = [{transform_indices = @transform_0, window_bounds = array<i64: 632, 128>}, {pipeline_mode = #tpu.pipeline_mode<synchronous>, transform_indices = @transform_1, window_bounds = array<i64: 1, 128>}, {pipeline_mode = #tpu.pipeline_mode<synchronous>, transform_indices = @transform_2, window_bounds = array<i64: 1, 128>}, {transform_indices = @transform_3, window_bounds = array<i64: 632, 128>}]} {
    %c0 = arith.constant 0 : index
    %c0_0 = arith.constant 0 : index
    %0 = vector.load %arg1[%c0, %c0_0] : memref<632x128xf32, #tpu.memory_space<vmem>>, vector<632x128xf32>
    %c0_1 = arith.constant 0 : index
    %c0_2 = arith.constant 0 : index
    %1 = vector.load %arg2[%c0_1, %c0_2] : memref<1x128xf32, #tpu.memory_space<vmem>>, vector<1x128xf32>
    %2 = vector.broadcast %1 : vector<1x128xf32> to vector<632x128xf32>
    %3 = arith.mulf %0, %2 : vector<632x128xf32>
    %c0_3 = arith.constant 0 : index
    %c0_4 = arith.constant 0 : index
    %4 = vector.load %arg3[%c0_3, %c0_4] : memref<1x128xf32, #tpu.memory_space<vmem>>, vector<1x128xf32>
    %5 = vector.broadcast %4 : vector<1x128xf32> to vector<632x128xf32>
    %6 = arith.addf %3, %5 : vector<632x128xf32>
    %7 = arith.negf %6 : vector<632x128xf32>
    %8 = math.exp %7 : vector<632x128xf32>
    %cst = arith.constant 1.000000e+00 : f32
    %9 = vector.broadcast %cst : f32 to vector<632x128xf32>
    %10 = arith.addf %9, %8 : vector<632x128xf32>
    %11 = arith.divf %9, %10 : vector<632x128xf32>
    %12 = arith.mulf %6, %11 : vector<632x128xf32>
    %c0_5 = arith.constant 0 : index
    %c0_6 = arith.constant 0 : index
    %13 = vector.load %arg4[%c0_5, %c0_6] : memref<632x128xf32, #tpu.memory_space<vmem>>, vector<632x128xf32>
    tpu.vector_store %arg4[%c0_5, %c0_6], %12 {strides = array<i32>} : memref<632x128xf32, #tpu.memory_space<vmem>>, vector<632x128xf32>,
    return
  }
  func.func @transform_0(%arg0: i32) -> (i32, i32) {
    %c0_i32 = arith.constant 0 : i32
    %c0_i32_0 = arith.constant 0 : i32
    return %arg0, %c0_i32 : i32, i32
  }
  func.func @transform_1(%arg0: i32) -> (i32, i32) {
    %c0_i32 = arith.constant 0 : i32
    %c0_i32_0 = arith.constant 0 : i32
    %c0_i32_1 = arith.constant 0 : i32
    return %c0_i32, %c0_i32_0 : i32, i32
  }
  func.func @transform_2(%arg0: i32) -> (i32, i32) {
    %c0_i32 = arith.constant 0 : i32
    %c0_i32_0 = arith.constant 0 : i32
    %c0_i32_1 = arith.constant 0 : i32
    return %c0_i32, %c0_i32_0 : i32, i32
  }
  func.func @transform_3(%arg0: i32) -> (i32, i32) {
    %c0_i32 = arith.constant 0 : i32
    %c0_i32_0 = arith.constant 0 : i32
    return %arg0, %c0_i32 : i32, i32
  }
}

</mosaic_0001>

<llo_original>
// kernel: _lambda_.3
$region0: #{_lambda_.3}
  #allocation0 [shape = 'u32[]', space=smem, size = 0x4, offset = 0x4, fixed_abs, tag = 'smem constant byte address 0x4 - core index']
  #allocation1 [shape = 'u32[144,128]{1,0:T(1,128)}', space=vmem, size = 0x12000, scoped, tag = 'internal scratch']
  %s0 = inlined_call_operand.vmem [shape: f32[632,128], index: 0, kind: input, shape index: {}]
  %s1 = inlined_call_operand.vmem [shape: f32[1,128], index: 1, kind: input, shape index: {}]
  %s2 = inlined_call_operand.vmem [shape: f32[1,128], index: 2, kind: input, shape index: {}]
  %s3 = inlined_call_operand.vmem [shape: f32[632,128], index: 3, kind: output, shape index: {}]
  %s4 = sld [smem:[#allocation0]]
  $region22: #{_lambda_.3} parent=0
    _
  %s6 = ssub.s32 1, %s4
  %s7 = scalar_select 0, %s6, %s4
  // Predicated region
  $region2: #{_lambda_.3} parent=0 // pred_check
    _
  $region3: #{_lambda_.3} parent=0 // pred_check_branch
    %9 = sbr.rel (0) target = $region5
  $region4: #{_lambda_.3} parent=0 // pred_region
    _
  $region5: #{_lambda_.3} parent=0 // pred_fallthru
    _
  // Predicated region
  $region6: #{_lambda_.3} parent=0 // pred_check
    _
  $region7: #{_lambda_.3} parent=0 // pred_check_branch
    %11 = sbr.rel (0) target = $region9
  $region8: #{_lambda_.3} parent=0 // pred_region
    _
  $region9: #{_lambda_.3} parent=0 // pred_fallthru
    _
  // Predicated region
  $region10: #{_lambda_.3} parent=0 // pred_check
    _
  $region11: #{_lambda_.3} parent=0 // pred_check_branch
    %13 = sbr.rel (0) target = $region13
  $region12: #{_lambda_.3} parent=0 // pred_region
    _
  $region13: #{_lambda_.3} parent=0 // pred_fallthru
    _
  %v14 = vld [vmem:[%s0] sm:$0xff]
  %v15 = vld [vmem:[%s0 + $0x8] sm:$0xff]
  %v16 = vld [vmem:[%s0 + $0x10] sm:$0xff]
  %v17 = vld [vmem:[%s0 + $0x18] sm:$0xff]
  %v18 = vld [vmem:[%s0 + $0x20] sm:$0xff]
  %v19 = vld [vmem:[%s0 + $0x28] sm:$0xff]
  %v20 = vld [vmem:[%s0 + $0x30] sm:$0xff]
  %v21 = vld [vmem:[%s0 + $0x38] sm:$0xff]
  %v22 = vld [vmem:[%s0 + $0x40] sm:$0xff]
  %v23 = vld [vmem:[%s0 + $0x48] sm:$0xff]
  %v24 = vld [vmem:[%s0 + $0x50] sm:$0xff]
  %v25 = vld [vmem:[%s0 + $0x58] sm:$0xff]
  %v26 = vld [vmem:[%s0 + $0x60] sm:$0xff]
  %v27 = vld [vmem:[%s0 + $0x68] sm:$0xff]
  %v28 = vld [vmem:[%s0 + $0x70] sm:$0xff]
  %v29 = vld [vmem:[%s0 + $0x78] sm:$0xff]
  %v30 = vld [vmem:[%s0 + $0x80] sm:$0xff]
  %v31 = vld [vmem:[%s0 + $0x88] sm:$0xff]
  %v32 = vld [vmem:[%s0 + $0x90] sm:$0xff]
  %v33 = vld [vmem:[%s0 + $0x98] sm:$0xff]
  %v34 = vld [vmem:[%s0 + $0xa0] sm:$0xff]
  %v35 = vld [vmem:[%s0 + $0xa8] sm:$0xff]
  %v36 = vld [vmem:[%s0 + $0xb0] sm:$0xff]
  %v37 = vld [vmem:[%s0 + $0xb8] sm:$0xff]
  %v38 = vld [vmem:[%s0 + $0xc0] sm:$0xff]
  %v39 = vld [vmem:[%s0 + $0xc8] sm:$0xff]
  %v40 = vld [vmem:[%s0 + $0xd0] sm:$0xff]
  %v41 = vld [vmem:[%s0 + $0xd8] sm:$0xff]
  %v42 = vld [vmem:[%s0 + $0xe0] sm:$0xff]
  %v43 = vld [vmem:[%s0 + $0xe8] sm:$0xff]
  %v44 = vld [vmem:[%s0 + $0xf0] sm:$0xff]
  %v45 = vld [vmem:[%s0 + $0xf8] sm:$0xff]
  %v46 = vld [vmem:[%s0 + $0x100] sm:$0xff]
  %v47 = vld [vmem:[%s0 + $0x108] sm:$0xff]
  %v48 = vld [vmem:[%s0 + $0x110] sm:$0xff]
  %v49 = vld [vmem:[%s0 + $0x118] sm:$0xff]
  %v50 = vld [vmem:[%s0 + $0x120] sm:$0xff]
  %v51 = vld [vmem:[%s0 + $0x128] sm:$0xff]
  %v52 = vld [vmem:[%s0 + $0x130] sm:$0xff]
  %v53 = vld [vmem:[%s0 + $0x138] sm:$0xff]
  %v54 = vld [vmem:[%s0 + $0x140] sm:$0xff]
  %v55 = vld [vmem:[%s0 + $0x148] sm:$0xff]
  %v56 = vld [vmem:[%s0 + $0x150] sm:$0xff]
  %v57 = vld [vmem:[%s0 + $0x158] sm:$0xff]
  %v58 = vld [vmem:[%s0 + $0x160] sm:$0xff]
  %v59 = vld [vmem:[%s0 + $0x168] sm:$0xff]
  %v60 = vld [vmem:[%s0 + $0x170] sm:$0xff]
  %v61 = vld [vmem:[%s0 + $0x178] sm:$0xff]
  %v62 = vld [vmem:[%s0 + $0x180] sm:$0xff]
  %v63 = vld [vmem:[%s0 + $0x188] sm:$0xff]
  %v64 = vld [vmem:[%s0 + $0x190] sm:$0xff]
  %v65 = vld [vmem:[%s0 + $0x198] sm:$0xff]
  %v66 = vld [vmem:[%s0 + $0x1a0] sm:$0xff]
  %v67 = vld [vmem:[%s0 + $0x1a8] sm:$0xff]
  %v68 = vld [vmem:[%s0 + $0x1b0] sm:$0xff]
  %v69 = vld [vmem:[%s0 + $0x1b8] sm:$0xff]
  %v70 = vld [vmem:[%s0 + $0x1c0] sm:$0xff]
  %v71 = vld [vmem:[%s0 + $0x1c8] sm:$0xff]
  %v72 = vld [vmem:[%s0 + $0x1d0] sm:$0xff]
  %v73 = vld [vmem:[%s0 + $0x1d8] sm:$0xff]
  %v74 = vld [vmem:[%s0 + $0x1e0] sm:$0xff]
  %v75 = vld [vmem:[%s0 + $0x1e8] sm:$0xff]
  %v76 = vld [vmem:[%s0 + $0x1f0] sm:$0xff]
  %v77 = vld [vmem:[%s0 + $0x1f8] sm:$0xff]
  %v78 = vld [vmem:[%s0 + $0x200] sm:$0xff]
  %v79 = vld [vmem:[%s0 + $0x208] sm:$0xff]
  %v80 = vld [vmem:[%s0 + $0x210] sm:$0xff]
  %v81 = vld [vmem:[%s0 + $0x218] sm:$0xff]
  %v82 = vld [vmem:[%s0 + $0x220] sm:$0xff]
  %v83 = vld [vmem:[%s0 + $0x228] sm:$0xff]
  %v84 = vld [vmem:[%s0 + $0x230] sm:$0xff]
  %v85 = vld [vmem:[%s0 + $0x238] sm:$0xff]
  %v86 = vld [vmem:[%s0 + $0x240] sm:$0xff]
  %v87 = vld [vmem:[%s0 + $0x248] sm:$0xff]
  %v88 = vld [vmem:[%s0 + $0x250] sm:$0xff]
  %v89 = vld [vmem:[%s0 + $0x258] sm:$0xff]
  %v90 = vld [vmem:[%s0 + $0x260] sm:$0xff]
  %v91 = vld [vmem:[%s0 + $0x268] sm:$0xff]
  %v92 = vld [vmem:[%s0 + $0x270] sm:$0xff]
  %v93 = vld [vmem:[%s1] sm:$0x1]
  %v95 = vlaneseq
  %v96 = vshrl.u32 %v95, 7
  %v97 = vsub.s32 0, %v96
  %v98 = vrot.slane %v93, %v97
  %v100 = vmul.f32 %v14, %v98
  %v101 = vmul.f32 %v15, %v98
  %v102 = vmul.f32 %v16, %v98
  %v103 = vmul.f32 %v17, %v98
  %v104 = vmul.f32 %v18, %v98
  %v105 = vmul.f32 %v19, %v98
  %v106 = vmul.f32 %v20, %v98
  %v107 = vmul.f32 %v21, %v98
  %v108 = vmul.f32 %v22, %v98
  %v109 = vmul.f32 %v23, %v98
  %v110 = vmul.f32 %v24, %v98
  %v111 = vmul.f32 %v25, %v98
  %v112 = vmul.f32 %v26, %v98
  %v113 = vmul.f32 %v27, %v98
  %v114 = vmul.f32 %v28, %v98
  %v115 = vmul.f32 %v29, %v98
  %v116 = vmul.f32 %v30, %v98
  %v117 = vmul.f32 %v31, %v98
  %v118 = vmul.f32 %v32, %v98
  %v119 = vmul.f32 %v33, %v98
  %v120 = vmul.f32 %v34, %v98
  %v121 = vmul.f32 %v35, %v98
  %v122 = vmul.f32 %v36, %v98
  %v123 = vmul.f32 %v37, %v98
  %v124 = vmul.f32 %v38, %v98
  %v125 = vmul.f32 %v39, %v98
  %v126 = vmul.f32 %v40, %v98
  %v127 = vmul.f32 %v41, %v98
  %v128 = vmul.f32 %v42, %v98
  %v129 = vmul.f32 %v43, %v98
  %v130 = vmul.f32 %v44, %v98
  %v131 = vmul.f32 %v45, %v98
  %v132 = vmul.f32 %v46, %v98
  %v133 = vmul.f32 %v47, %v98
  %v134 = vmul.f32 %v48, %v98
  %v135 = vmul.f32 %v49, %v98
  %v136 = vmul.f32 %v50, %v98
  %v137 = vmul.f32 %v51, %v98
  %v138 = vmul.f32 %v52, %v98
  %v139 = vmul.f32 %v53, %v98
  %v140 = vmul.f32 %v54, %v98
  %v141 = vmul.f32 %v55, %v98
  %v142 = vmul.f32 %v56, %v98
  %v143 = vmul.f32 %v57, %v98
  %v144 = vmul.f32 %v58, %v98
  %v145 = vmul.f32 %v59, %v98
  %v146 = vmul.f32 %v60, %v98
  %v147 = vmul.f32 %v61, %v98
  %v148 = vmul.f32 %v62, %v98
  %v149 = vmul.f32 %v63, %v98
  %v150 = vmul.f32 %v64, %v98
  %v151 = vmul.f32 %v65, %v98
  %v152 = vmul.f32 %v66, %v98
  %v153 = vmul.f32 %v67, %v98
  %v154 = vmul.f32 %v68, %v98
  %v155 = vmul.f32 %v69, %v98
  %v156 = vmul.f32 %v70, %v98
  %v157 = vmul.f32 %v71, %v98
  %v158 = vmul.f32 %v72, %v98
  %v159 = vmul.f32 %v73, %v98
  %v160 = vmul.f32 %v74, %v98
  %v161 = vmul.f32 %v75, %v98
  %v162 = vmul.f32 %v76, %v98
  %v163 = vmul.f32 %v77, %v98
  %v164 = vmul.f32 %v78, %v98
  %v165 = vmul.f32 %v79, %v98
  %v166 = vmul.f32 %v80, %v98
  %v167 = vmul.f32 %v81, %v98
  %v168 = vmul.f32 %v82, %v98
  %v169 = vmul.f32 %v83, %v98
  %v170 = vmul.f32 %v84, %v98
  %v171 = vmul.f32 %v85, %v98
  %v172 = vmul.f32 %v86, %v98
  %v173 = vmul.f32 %v87, %v98
  %v174 = vmul.f32 %v88, %v98
  %v175 = vmul.f32 %v89, %v98
  %v176 = vmul.f32 %v90, %v98
  %v177 = vmul.f32 %v91, %v98
  %v178 = vmul.f32 %v92, %v98
  %v179 = vld [vmem:[%s2] sm:$0x1]
  %v181 = vlaneseq
  %v182 = vshrl.u32 %v181, 7
  %v183 = vsub.s32 0, %v182
  %v184 = vrot.slane %v179, %v183
  %v186 = vadd.f32 %v100, %v184
  %v187 = vadd.f32 %v101, %v184
  %v188 = vadd.f32 %v102, %v184
  %v189 = vadd.f32 %v103, %v184
  %v190 = vadd.f32 %v104, %v184
  %v191 = vadd.f32 %v105, %v184
  %v192 = vadd.f32 %v106, %v184
  %v193 = vadd.f32 %v107, %v184
  %v194 = vadd.f32 %v108, %v184
  %v195 = vadd.f32 %v109, %v184
  %v196 = vadd.f32 %v110, %v184
  %v197 = vadd.f32 %v111, %v184
  %v198 = vadd.f32 %v112, %v184
  %v199 = vadd.f32 %v113, %v184
  %v200 = vadd.f32 %v114, %v184
  %v201 = vadd.f32 %v115, %v184
  %v202 = vadd.f32 %v116, %v184
  %v203 = vadd.f32 %v117, %v184
  %v204 = vadd.f32 %v118, %v184
  %v205 = vadd.f32 %v119, %v184
  %v206 = vadd.f32 %v120, %v184
  %v207 = vadd.f32 %v121, %v184
  %v208 = vadd.f32 %v122, %v184
  %v209 = vadd.f32 %v123, %v184
  %v210 = vadd.f32 %v124, %v184
  %v211 = vadd.f32 %v125, %v184
  %v212 = vadd.f32 %v126, %v184
  %v213 = vadd.f32 %v127, %v184
  %v214 = vadd.f32 %v128, %v184
  %v215 = vadd.f32 %v129, %v184
  %v216 = vadd.f32 %v130, %v184
  %v217 = vadd.f32 %v131, %v184
  %v218 = vadd.f32 %v132, %v184
  %v219 = vadd.f32 %v133, %v184
  %v220 = vadd.f32 %v134, %v184
  %v221 = vadd.f32 %v135, %v184
  %v222 = vadd.f32 %v136, %v184
  %v223 = vadd.f32 %v137, %v184
  %v224 = vadd.f32 %v138, %v184
  %v225 = vadd.f32 %v139, %v184
  %v226 = vadd.f32 %v140, %v184
  %v227 = vadd.f32 %v141, %v184
  %v228 = vadd.f32 %v142, %v184
  %v229 = vadd.f32 %v143, %v184
  %v230 = vadd.f32 %v144, %v184
  %v231 = vadd.f32 %v145, %v184
  %v232 = vadd.f32 %v146, %v184
  %v233 = vadd.f32 %v147, %v184
  %v234 = vadd.f32 %v148, %v184
  %v235 = vadd.f32 %v149, %v184
  %v236 = vadd.f32 %v150, %v184
  %v237 = vadd.f32 %v151, %v184
  %v238 = vadd.f32 %v152, %v184
  %v239 = vadd.f32 %v153, %v184
  %v240 = vadd.f32 %v154, %v184
  %v241 = vadd.f32 %v155, %v184
  %v242 = vadd.f32 %v156, %v184
  %v243 = vadd.f32 %v157, %v184
  %v244 = vadd.f32 %v158, %v184
  %v245 = vadd.f32 %v159, %v184
  %v246 = vadd.f32 %v160, %v184
  %v247 = vadd.f32 %v161, %v184
  %v248 = vadd.f32 %v162, %v184
  %v249 = vadd.f32 %v163, %v184
  %v250 = vadd.f32 %v164, %v184
  %v251 = vadd.f32 %v165, %v184
  %v252 = vadd.f32 %v166, %v184
  %v253 = vadd.f32 %v167, %v184
  %v254 = vadd.f32 %v168, %v184
  %v255 = vadd.f32 %v169, %v184
  %v256 = vadd.f32 %v170, %v184
  %v257 = vadd.f32 %v171, %v184
  %v258 = vadd.f32 %v172, %v184
  %v259 = vadd.f32 %v173, %v184
  %v260 = vadd.f32 %v174, %v184
  %v261 = vadd.f32 %v175, %v184
  %v262 = vadd.f32 %v176, %v184
  %v263 = vadd.f32 %v177, %v184
  %v264 = vadd.f32 %v178, %v184
  %v265 = vxor.u32 %v186, 2147483648
  %v266 = vxor.u32 %v187, 2147483648
  %v267 = vxor.u32 %v188, 2147483648
  %v268 = vxor.u32 %v189, 2147483648
  %v269 = vxor.u32 %v190, 2147483648
  %v270 = vxor.u32 %v191, 2147483648
  %v271 = vxor.u32 %v192, 2147483648
  %v272 = vxor.u32 %v193, 2147483648
  %v273 = vxor.u32 %v194, 2147483648
  %v274 = vxor.u32 %v195, 2147483648
  %v275 = vxor.u32 %v196, 2147483648
  %v276 = vxor.u32 %v197, 2147483648
  %v277 = vxor.u32 %v198, 2147483648
  %v278 = vxor.u32 %v199, 2147483648
  %v279 = vxor.u32 %v200, 2147483648
  %v280 = vxor.u32 %v201, 2147483648
  %v281 = vxor.u32 %v202, 2147483648
  %v282 = vxor.u32 %v203, 2147483648
  %v283 = vxor.u32 %v204, 2147483648
  %v284 = vxor.u32 %v205, 2147483648
  %v285 = vxor.u32 %v206, 2147483648
  %v286 = vxor.u32 %v207, 2147483648
  %v287 = vxor.u32 %v208, 2147483648
  %v288 = vxor.u32 %v209, 2147483648
  %v289 = vxor.u32 %v210, 2147483648
  %v290 = vxor.u32 %v211, 2147483648
  %v291 = vxor.u32 %v212, 2147483648
  %v292 = vxor.u32 %v213, 2147483648
  %v293 = vxor.u32 %v214, 2147483648
  %v294 = vxor.u32 %v215, 2147483648
  %v295 = vxor.u32 %v216, 2147483648
  %v296 = vxor.u32 %v217, 2147483648
  %v297 = vxor.u32 %v218, 2147483648
  %v298 = vxor.u32 %v219, 2147483648
  %v299 = vxor.u32 %v220, 2147483648
  %v300 = vxor.u32 %v221, 2147483648
  %v301 = vxor.u32 %v222, 2147483648
  %v302 = vxor.u32 %v223, 2147483648
  %v303 = vxor.u32 %v224, 2147483648
  %v304 = vxor.u32 %v225, 2147483648
  %v305 = vxor.u32 %v226, 2147483648
  %v306 = vxor.u32 %v227, 2147483648
  %v307 = vxor.u32 %v228, 2147483648
  %v308 = vxor.u32 %v229, 2147483648
  %v309 = vxor.u32 %v230, 2147483648
  %v310 = vxor.u32 %v231, 2147483648
  %v311 = vxor.u32 %v232, 2147483648
  %v312 = vxor.u32 %v233, 2147483648
  %v313 = vxor.u32 %v234, 2147483648
  %v314 = vxor.u32 %v235, 2147483648
  %v315 = vxor.u32 %v236, 2147483648
  %v316 = vxor.u32 %v237, 2147483648
  %v317 = vxor.u32 %v238, 2147483648
  %v318 = vxor.u32 %v239, 2147483648
  %v319 = vxor.u32 %v240, 2147483648
  %v320 = vxor.u32 %v241, 2147483648
  %v321 = vxor.u32 %v242, 2147483648
  %v322 = vxor.u32 %v243, 2147483648
  %v323 = vxor.u32 %v244, 2147483648
  %v324 = vxor.u32 %v245, 2147483648
  %v325 = vxor.u32 %v246, 2147483648
  %v326 = vxor.u32 %v247, 2147483648
  %v327 = vxor.u32 %v248, 2147483648
  %v328 = vxor.u32 %v249, 2147483648
  %v329 = vxor.u32 %v250, 2147483648
  %v330 = vxor.u32 %v251, 2147483648
  %v331 = vxor.u32 %v252, 2147483648
  %v332 = vxor.u32 %v253, 2147483648
  %v333 = vxor.u32 %v254, 2147483648
  %v334 = vxor.u32 %v255, 2147483648
  %v335 = vxor.u32 %v256, 2147483648
  %v336 = vxor.u32 %v257, 2147483648
  %v337 = vxor.u32 %v258, 2147483648
  %v338 = vxor.u32 %v259, 2147483648
  %v339 = vxor.u32 %v260, 2147483648
  %v340 = vxor.u32 %v261, 2147483648
  %v341 = vxor.u32 %v262, 2147483648
  %v342 = vxor.u32 %v263, 2147483648
  %v343 = vxor.u32 %v264, 2147483648
  %v344 = vmul.f32 %v265, 1.442695
  %v345 = vpow.pop %v344
  %v346 = vmul.f32 %v266, 1.442695
  %v347 = vpow.pop %v346
  %v348 = vmul.f32 %v267, 1.442695
  %v349 = vpow.pop %v348
  %v350 = vmul.f32 %v268, 1.442695
  %v351 = vpow.pop %v350
  %v352 = vmul.f32 %v269, 1.442695
  %v353 = vpow.pop %v352
  %v354 = vmul.f32 %v270, 1.442695
  %v355 = vpow.pop %v354
  %v356 = vmul.f32 %v271, 1.442695
  %v357 = vpow.pop %v356
  %v358 = vmul.f32 %v272, 1.442695
  %v359 = vpow.pop %v358
  %v360 = vmul.f32 %v273, 1.442695
  %v361 = vpow.pop %v360
  %v362 = vmul.f32 %v274, 1.442695
  %v363 = vpow.pop %v362
  %v364 = vmul.f32 %v275, 1.442695
  %v365 = vpow.pop %v364
  %v366 = vmul.f32 %v276, 1.442695
  %v367 = vpow.pop %v366
  %v368 = vmul.f32 %v277, 1.442695
  %v369 = vpow.pop %v368
  %v370 = vmul.f32 %v278, 1.442695
  %v371 = vpow.pop %v370
  %v372 = vmul.f32 %v279, 1.442695
  %v373 = vpow.pop %v372
  %v374 = vmul.f32 %v280, 1.442695
  %v375 = vpow.pop %v374
  %v376 = vmul.f32 %v281, 1.442695
  %v377 = vpow.pop %v376
  %v378 = vmul.f32 %v282, 1.442695
  %v379 = vpow.pop %v378
  %v380 = vmul.f32 %v283, 1.442695
  %v381 = vpow.pop %v380
  %v382 = vmul.f32 %v284, 1.442695
  %v383 = vpow.pop %v382
  %v384 = vmul.f32 %v285, 1.442695
  %v385 = vpow.pop %v384
  %v386 = vmul.f32 %v286, 1.442695
  %v387 = vpow.pop %v386
  %v388 = vmul.f32 %v287, 1.442695
  %v389 = vpow.pop %v388
  %v390 = vmul.f32 %v288, 1.442695
  %v391 = vpow.pop %v390
  %v392 = vmul.f32 %v289, 1.442695
  %v393 = vpow.pop %v392
  %v394 = vmul.f32 %v290, 1.442695
  %v395 = vpow.pop %v394
  %v396 = vmul.f32 %v291, 1.442695
  %v397 = vpow.pop %v396
  %v398 = vmul.f32 %v292, 1.442695
  %v399 = vpow.pop %v398
  %v400 = vmul.f32 %v293, 1.442695
  %v401 = vpow.pop %v400
  %v402 = vmul.f32 %v294, 1.442695
  %v403 = vpow.pop %v402
  %v404 = vmul.f32 %v295, 1.442695
  %v405 = vpow.pop %v404
  %v406 = vmul.f32 %v296, 1.442695
  %v407 = vpow.pop %v406
  %v408 = vmul.f32 %v297, 1.442695
  %v409 = vpow.pop %v408
  %v410 = vmul.f32 %v298, 1.442695
  %v411 = vpow.pop %v410
  %v412 = vmul.f32 %v299, 1.442695
  %v413 = vpow.pop %v412
  %v414 = vmul.f32 %v300, 1.442695
  %v415 = vpow.pop %v414
  %v416 = vmul.f32 %v301, 1.442695
  %v417 = vpow.pop %v416
  %v418 = vmul.f32 %v302, 1.442695
  %v419 = vpow.pop %v418
  %v420 = vmul.f32 %v303, 1.442695
  %v421 = vpow.pop %v420
  %v422 = vmul.f32 %v304, 1.442695
  %v423 = vpow.pop %v422
  %v424 = vmul.f32 %v305, 1.442695
  %v425 = vpow.pop %v424
  %v426 = vmul.f32 %v306, 1.442695
  %v427 = vpow.pop %v426
  %v428 = vmul.f32 %v307, 1.442695
  %v429 = vpow.pop %v428
  %v430 = vmul.f32 %v308, 1.442695
  %v431 = vpow.pop %v430
  %v432 = vmul.f32 %v309, 1.442695
  %v433 = vpow.pop %v432
  %v434 = vmul.f32 %v310, 1.442695
  %v435 = vpow.pop %v434
  %v436 = vmul.f32 %v311, 1.442695
  %v437 = vpow.pop %v436
  %v438 = vmul.f32 %v312, 1.442695
  %v439 = vpow.pop %v438
  %v440 = vmul.f32 %v313, 1.442695
  %v441 = vpow.pop %v440
  %v442 = vmul.f32 %v314, 1.442695
  %v443 = vpow.pop %v442
  %v444 = vmul.f32 %v315, 1.442695
  %v445 = vpow.pop %v444
  %v446 = vmul.f32 %v316, 1.442695
  %v447 = vpow.pop %v446
  %v448 = vmul.f32 %v317, 1.442695
  %v449 = vpow.pop %v448
  %v450 = vmul.f32 %v318, 1.442695
  %v451 = vpow.pop %v450
  %v452 = vmul.f32 %v319, 1.442695
  %v453 = vpow.pop %v452
  %v454 = vmul.f32 %v320, 1.442695
  %v455 = vpow.pop %v454
  %v456 = vmul.f32 %v321, 1.442695
  %v457 = vpow.pop %v456
  %v458 = vmul.f32 %v322, 1.442695
  %v459 = vpow.pop %v458
  %v460 = vmul.f32 %v323, 1.442695
  %v461 = vpow.pop %v460
  %v462 = vmul.f32 %v324, 1.442695
  %v463 = vpow.pop %v462
  %v464 = vmul.f32 %v325, 1.442695
  %v465 = vpow.pop %v464
  %v466 = vmul.f32 %v326, 1.442695
  %v467 = vpow.pop %v466
  %v468 = vmul.f32 %v327, 1.442695
  %v469 = vpow.pop %v468
  %v470 = vmul.f32 %v328, 1.442695
  %v471 = vpow.pop %v470
  %v472 = vmul.f32 %v329, 1.442695
  %v473 = vpow.pop %v472
  %v474 = vmul.f32 %v330, 1.442695
  %v475 = vpow.pop %v474
  %v476 = vmul.f32 %v331, 1.442695
  %v477 = vpow.pop %v476
  %v478 = vmul.f32 %v332, 1.442695
  %v479 = vpow.pop %v478
  %v480 = vmul.f32 %v333, 1.442695
  %v481 = vpow.pop %v480
  %v482 = vmul.f32 %v334, 1.442695
  %v483 = vpow.pop %v482
  %v484 = vmul.f32 %v335, 1.442695
  %v485 = vpow.pop %v484
  %v486 = vmul.f32 %v336, 1.442695
  %v487 = vpow.pop %v486
  %v488 = vmul.f32 %v337, 1.442695
  %v489 = vpow.pop %v488
  %v490 = vmul.f32 %v338, 1.442695
  %v491 = vpow.pop %v490
  %v492 = vmul.f32 %v339, 1.442695
  %v493 = vpow.pop %v492
  %v494 = vmul.f32 %v340, 1.442695
  %v495 = vpow.pop %v494
  %v496 = vmul.f32 %v341, 1.442695
  %v497 = vpow.pop %v496
  %v498 = vmul.f32 %v342, 1.442695
  %v499 = vpow.pop %v498
  %v500 = vmul.f32 %v343, 1.442695
  %v501 = vpow.pop %v500
  %v502 = vadd.f32 %v345, 1.0
  %v503 = vadd.f32 %v347, 1.0
  %v504 = vadd.f32 %v349, 1.0
  %v505 = vadd.f32 %v351, 1.0
  %v506 = vadd.f32 %v353, 1.0
  %v507 = vadd.f32 %v355, 1.0
  %v508 = vadd.f32 %v357, 1.0
  %v509 = vadd.f32 %v359, 1.0
  %v510 = vadd.f32 %v361, 1.0
  %v511 = vadd.f32 %v363, 1.0
  %v512 = vadd.f32 %v365, 1.0
  %v513 = vadd.f32 %v367, 1.0
  %v514 = vadd.f32 %v369, 1.0
  %v515 = vadd.f32 %v371, 1.0
  %v516 = vadd.f32 %v373, 1.0
  %v517 = vadd.f32 %v375, 1.0
  %v518 = vadd.f32 %v377, 1.0
  %v519 = vadd.f32 %v379, 1.0
  %v520 = vadd.f32 %v381, 1.0
  %v521 = vadd.f32 %v383, 1.0
  %v522 = vadd.f32 %v385, 1.0
  %v523 = vadd.f32 %v387, 1.0
  %v524 = vadd.f32 %v389, 1.0
  %v525 = vadd.f32 %v391, 1.0
  %v526 = vadd.f32 %v393, 1.0
  %v527 = vadd.f32 %v395, 1.0
  %v528 = vadd.f32 %v397, 1.0
  %v529 = vadd.f32 %v399, 1.0
  %v530 = vadd.f32 %v401, 1.0
  %v531 = vadd.f32 %v403, 1.0
  %v532 = vadd.f32 %v405, 1.0
  %v533 = vadd.f32 %v407, 1.0
  %v534 = vadd.f32 %v409, 1.0
  %v535 = vadd.f32 %v411, 1.0
  %v536 = vadd.f32 %v413, 1.0
  %v537 = vadd.f32 %v415, 1.0
  %v538 = vadd.f32 %v417, 1.0
  %v539 = vadd.f32 %v419, 1.0
  %v540 = vadd.f32 %v421, 1.0
  %v541 = vadd.f32 %v423, 1.0
  %v542 = vadd.f32 %v425, 1.0
  %v543 = vadd.f32 %v427, 1.0
  %v544 = vadd.f32 %v429, 1.0
  %v545 = vadd.f32 %v431, 1.0
  %v546 = vadd.f32 %v433, 1.0
  %v547 = vadd.f32 %v435, 1.0
  %v548 = vadd.f32 %v437, 1.0
  %v549 = vadd.f32 %v439, 1.0
  %v550 = vadd.f32 %v441, 1.0
  %v551 = vadd.f32 %v443, 1.0
  %v552 = vadd.f32 %v445, 1.0
  %v553 = vadd.f32 %v447, 1.0
  %v554 = vadd.f32 %v449, 1.0
  %v555 = vadd.f32 %v451, 1.0
  %v556 = vadd.f32 %v453, 1.0
  %v557 = vadd.f32 %v455, 1.0
  %v558 = vadd.f32 %v457, 1.0
  %v559 = vadd.f32 %v459, 1.0
  %v560 = vadd.f32 %v461, 1.0
  %v561 = vadd.f32 %v463, 1.0
  %v562 = vadd.f32 %v465, 1.0
  %v563 = vadd.f32 %v467, 1.0
  %v564 = vadd.f32 %v469, 1.0
  %v565 = vadd.f32 %v471, 1.0
  %v566 = vadd.f32 %v473, 1.0
  %v567 = vadd.f32 %v475, 1.0
  %v568 = vadd.f32 %v477, 1.0
  %v569 = vadd.f32 %v479, 1.0
  %v570 = vadd.f32 %v481, 1.0
  %v571 = vadd.f32 %v483, 1.0
  %v572 = vadd.f32 %v485, 1.0
  %v573 = vadd.f32 %v487, 1.0
  %v574 = vadd.f32 %v489, 1.0
  %v575 = vadd.f32 %v491, 1.0
  %v576 = vadd.f32 %v493, 1.0
  %v577 = vadd.f32 %v495, 1.0
  %v578 = vadd.f32 %v497, 1.0
  %v579 = vadd.f32 %v499, 1.0
  %v580 = vadd.f32 %v501, 1.0
  %v581 = vrcp.pop %v502
  %v582 = vmul.f32 1.0, %v581
  %v583 = vrcp.pop %v503
  %v584 = vmul.f32 1.0, %v583
  %v585 = vrcp.pop %v504
  %v586 = vmul.f32 1.0, %v585
  %v587 = vrcp.pop %v505
  %v588 = vmul.f32 1.0, %v587
  %v589 = vrcp.pop %v506
  %v590 = vmul.f32 1.0, %v589
  %v591 = vrcp.pop %v507
  %v592 = vmul.f32 1.0, %v591
  %v593 = vrcp.pop %v508
  %v594 = vmul.f32 1.0, %v593
  %v595 = vrcp.pop %v509
  %v596 = vmul.f32 1.0, %v595
  %v597 = vrcp.pop %v510
  %v598 = vmul.f32 1.0, %v597
  %v599 = vrcp.pop %v511
  %v600 = vmul.f32 1.0, %v599
  %v601 = vrcp.pop %v512
  %v602 = vmul.f32 1.0, %v601
  %v603 = vrcp.pop %v513
  %v604 = vmul.f32 1.0, %v603
  %v605 = vrcp.pop %v514
  %v606 = vmul.f32 1.0, %v605
  %v607 = vrcp.pop %v515
  %v608 = vmul.f32 1.0, %v607
  %v609 = vrcp.pop %v516
  %v610 = vmul.f32 1.0, %v609
  %v611 = vrcp.pop %v517
  %v612 = vmul.f32 1.0, %v611
  %v613 = vrcp.pop %v518
  %v614 = vmul.f32 1.0, %v613
  %v615 = vrcp.pop %v519
  %v616 = vmul.f32 1.0, %v615
  %v617 = vrcp.pop %v520
  %v618 = vmul.f32 1.0, %v617
  %v619 = vrcp.pop %v521
  %v620 = vmul.f32 1.0, %v619
  %v621 = vrcp.pop %v522
  %v622 = vmul.f32 1.0, %v621
  %v623 = vrcp.pop %v523
  %v624 = vmul.f32 1.0, %v623
  %v625 = vrcp.pop %v524
  %v626 = vmul.f32 1.0, %v625
  %v627 = vrcp.pop %v525
  %v628 = vmul.f32 1.0, %v627
  %v629 = vrcp.pop %v526
  %v630 = vmul.f32 1.0, %v629
  %v631 = vrcp.pop %v527
  %v632 = vmul.f32 1.0, %v631
  %v633 = vrcp.pop %v528
  %v634 = vmul.f32 1.0, %v633
  %v635 = vrcp.pop %v529
  %v636 = vmul.f32 1.0, %v635
  %v637 = vrcp.pop %v530
  %v638 = vmul.f32 1.0, %v637
  %v639 = vrcp.pop %v531
  %v640 = vmul.f32 1.0, %v639
  %v641 = vrcp.pop %v532
  %v642 = vmul.f32 1.0, %v641
  %v643 = vrcp.pop %v533
  %v644 = vmul.f32 1.0, %v643
  %v645 = vrcp.pop %v534
  %v646 = vmul.f32 1.0, %v645
  %v647 = vrcp.pop %v535
  %v648 = vmul.f32 1.0, %v647
  %v649 = vrcp.pop %v536
  %v650 = vmul.f32 1.0, %v649
  %v651 = vrcp.pop %v537
  %v652 = vmul.f32 1.0, %v651
  %v653 = vrcp.pop %v538
  %v654 = vmul.f32 1.0, %v653
  %v655 = vrcp.pop %v539
  %v656 = vmul.f32 1.0, %v655
  %v657 = vrcp.pop %v540
  %v658 = vmul.f32 1.0, %v657
  %v659 = vrcp.pop %v541
  %v660 = vmul.f32 1.0, %v659
  %v661 = vrcp.pop %v542
  %v662 = vmul.f32 1.0, %v661
  %v663 = vrcp.pop %v543
  %v664 = vmul.f32 1.0, %v663
  %v665 = vrcp.pop %v544
  %v666 = vmul.f32 1.0, %v665
  %v667 = vrcp.pop %v545
  %v668 = vmul.f32 1.0, %v667
  %v669 = vrcp.pop %v546
  %v670 = vmul.f32 1.0, %v669
  %v671 = vrcp.pop %v547
  %v672 = vmul.f32 1.0, %v671
  %v673 = vrcp.pop %v548
  %v674 = vmul.f32 1.0, %v673
  %v675 = vrcp.pop %v549
  %v676 = vmul.f32 1.0, %v675
  %v677 = vrcp.pop %v550
  %v678 = vmul.f32 1.0, %v677
  %v679 = vrcp.pop %v551
  %v680 = vmul.f32 1.0, %v679
  %v681 = vrcp.pop %v552
  %v682 = vmul.f32 1.0, %v681
  %v683 = vrcp.pop %v553
  %v684 = vmul.f32 1.0, %v683
  %v685 = vrcp.pop %v554
  %v686 = vmul.f32 1.0, %v685
  %v687 = vrcp.pop %v555
  %v688 = vmul.f32 1.0, %v687
  %v689 = vrcp.pop %v556
  %v690 = vmul.f32 1.0, %v689
  %v691 = vrcp.pop %v557
  %v692 = vmul.f32 1.0, %v691
  %v693 = vrcp.pop %v558
  %v694 = vmul.f32 1.0, %v693
  %v695 = vrcp.pop %v559
  %v696 = vmul.f32 1.0, %v695
  %v697 = vrcp.pop %v560
  %v698 = vmul.f32 1.0, %v697
  %v699 = vrcp.pop %v561
  %v700 = vmul.f32 1.0, %v699
  %v701 = vrcp.pop %v562
  %v702 = vmul.f32 1.0, %v701
  %v703 = vrcp.pop %v563
  %v704 = vmul.f32 1.0, %v703
  %v705 = vrcp.pop %v564
  %v706 = vmul.f32 1.0, %v705
  %v707 = vrcp.pop %v565
  %v708 = vmul.f32 1.0, %v707
  %v709 = vrcp.pop %v566
  %v710 = vmul.f32 1.0, %v709
  %v711 = vrcp.pop %v567
  %v712 = vmul.f32 1.0, %v711
  %v713 = vrcp.pop %v568
  %v714 = vmul.f32 1.0, %v713
  %v715 = vrcp.pop %v569
  %v716 = vmul.f32 1.0, %v715
  %v717 = vrcp.pop %v570
  %v718 = vmul.f32 1.0, %v717
  %v719 = vrcp.pop %v571
  %v720 = vmul.f32 1.0, %v719
  %v721 = vrcp.pop %v572
  %v722 = vmul.f32 1.0, %v721
  %v723 = vrcp.pop %v573
  %v724 = vmul.f32 1.0, %v723
  %v725 = vrcp.pop %v574
  %v726 = vmul.f32 1.0, %v725
  %v727 = vrcp.pop %v575
  %v728 = vmul.f32 1.0, %v727
  %v729 = vrcp.pop %v576
  %v730 = vmul.f32 1.0, %v729
  %v731 = vrcp.pop %v577
  %v732 = vmul.f32 1.0, %v731
  %v733 = vrcp.pop %v578
  %v734 = vmul.f32 1.0, %v733
  %v735 = vrcp.pop %v579
  %v736 = vmul.f32 1.0, %v735
  %v737 = vrcp.pop %v580
  %v738 = vmul.f32 1.0, %v737
  %v739 = vmul.f32 %v186, %v582
  %v740 = vmul.f32 %v187, %v584
  %v741 = vmul.f32 %v188, %v586
  %v742 = vmul.f32 %v189, %v588
  %v743 = vmul.f32 %v190, %v590
  %v744 = vmul.f32 %v191, %v592
  %v745 = vmul.f32 %v192, %v594
  %v746 = vmul.f32 %v193, %v596
  %v747 = vmul.f32 %v194, %v598
  %v748 = vmul.f32 %v195, %v600
  %v749 = vmul.f32 %v196, %v602
  %v750 = vmul.f32 %v197, %v604
  %v751 = vmul.f32 %v198, %v606
  %v752 = vmul.f32 %v199, %v608
  %v753 = vmul.f32 %v200, %v610
  %v754 = vmul.f32 %v201, %v612
  %v755 = vmul.f32 %v202, %v614
  %v756 = vmul.f32 %v203, %v616
  %v757 = vmul.f32 %v204, %v618
  %v758 = vmul.f32 %v205, %v620
  %v759 = vmul.f32 %v206, %v622
  %v760 = vmul.f32 %v207, %v624
  %v761 = vmul.f32 %v208, %v626
  %v762 = vmul.f32 %v209, %v628
  %v763 = vmul.f32 %v210, %v630
  %v764 = vmul.f32 %v211, %v632
  %v765 = vmul.f32 %v212, %v634
  %v766 = vmul.f32 %v213, %v636
  %v767 = vmul.f32 %v214, %v638
  %v768 = vmul.f32 %v215, %v640
  %v769 = vmul.f32 %v216, %v642
  %v770 = vmul.f32 %v217, %v644
  %v771 = vmul.f32 %v218, %v646
  %v772 = vmul.f32 %v219, %v648
  %v773 = vmul.f32 %v220, %v650
  %v774 = vmul.f32 %v221, %v652
  %v775 = vmul.f32 %v222, %v654
  %v776 = vmul.f32 %v223, %v656
  %v777 = vmul.f32 %v224, %v658
  %v778 = vmul.f32 %v225, %v660
  %v779 = vmul.f32 %v226, %v662
  %v780 = vmul.f32 %v227, %v664
  %v781 = vmul.f32 %v228, %v666
  %v782 = vmul.f32 %v229, %v668
  %v783 = vmul.f32 %v230, %v670
  %v784 = vmul.f32 %v231, %v672
  %v785 = vmul.f32 %v232, %v674
  %v786 = vmul.f32 %v233, %v676
  %v787 = vmul.f32 %v234, %v678
  %v788 = vmul.f32 %v235, %v680
  %v789 = vmul.f32 %v236, %v682
  %v790 = vmul.f32 %v237, %v684
  %v791 = vmul.f32 %v238, %v686
  %v792 = vmul.f32 %v239, %v688
  %v793 = vmul.f32 %v240, %v690
  %v794 = vmul.f32 %v241, %v692
  %v795 = vmul.f32 %v242, %v694
  %v796 = vmul.f32 %v243, %v696
  %v797 = vmul.f32 %v244, %v698
  %v798 = vmul.f32 %v245, %v700
  %v799 = vmul.f32 %v246, %v702
  %v800 = vmul.f32 %v247, %v704
  %v801 = vmul.f32 %v248, %v706
  %v802 = vmul.f32 %v249, %v708
  %v803 = vmul.f32 %v250, %v710
  %v804 = vmul.f32 %v251, %v712
  %v805 = vmul.f32 %v252, %v714
  %v806 = vmul.f32 %v253, %v716
  %v807 = vmul.f32 %v254, %v718
  %v808 = vmul.f32 %v255, %v720
  %v809 = vmul.f32 %v256, %v722
  %v810 = vmul.f32 %v257, %v724
  %v811 = vmul.f32 %v258, %v726
  %v812 = vmul.f32 %v259, %v728
  %v813 = vmul.f32 %v260, %v730
  %v814 = vmul.f32 %v261, %v732
  %v815 = vmul.f32 %v262, %v734
  %v816 = vmul.f32 %v263, %v736
  %v817 = vmul.f32 %v264, %v738
  %818 = vst [vmem:[%s3] sm:$0xff] %v739
  %819 = vst [vmem:[%s3 + $0x8] sm:$0xff] %v740
  %820 = vst [vmem:[%s3 + $0x10] sm:$0xff] %v741
  %821 = vst [vmem:[%s3 + $0x18] sm:$0xff] %v742
  %822 = vst [vmem:[%s3 + $0x20] sm:$0xff] %v743
  %823 = vst [vmem:[%s3 + $0x28] sm:$0xff] %v744
  %824 = vst [vmem:[%s3 + $0x30] sm:$0xff] %v745
  %825 = vst [vmem:[%s3 + $0x38] sm:$0xff] %v746
  %826 = vst [vmem:[%s3 + $0x40] sm:$0xff] %v747
  %827 = vst [vmem:[%s3 + $0x48] sm:$0xff] %v748
  %828 = vst [vmem:[%s3 + $0x50] sm:$0xff] %v749
  %829 = vst [vmem:[%s3 + $0x58] sm:$0xff] %v750
  %830 = vst [vmem:[%s3 + $0x60] sm:$0xff] %v751
  %831 = vst [vmem:[%s3 + $0x68] sm:$0xff] %v752
  %832 = vst [vmem:[%s3 + $0x70] sm:$0xff] %v753
  %833 = vst [vmem:[%s3 + $0x78] sm:$0xff] %v754
  %834 = vst [vmem:[%s3 + $0x80] sm:$0xff] %v755
  %835 = vst [vmem:[%s3 + $0x88] sm:$0xff] %v756
  %836 = vst [vmem:[%s3 + $0x90] sm:$0xff] %v757
  %837 = vst [vmem:[%s3 + $0x98] sm:$0xff] %v758
  %838 = vst [vmem:[%s3 + $0xa0] sm:$0xff] %v759
  %839 = vst [vmem:[%s3 + $0xa8] sm:$0xff] %v760
  %840 = vst [vmem:[%s3 + $0xb0] sm:$0xff] %v761
  %841 = vst [vmem:[%s3 + $0xb8] sm:$0xff] %v762
  %842 = vst [vmem:[%s3 + $0xc0] sm:$0xff] %v763
  %843 = vst [vmem:[%s3 + $0xc8] sm:$0xff] %v764
  %844 = vst [vmem:[%s3 + $0xd0] sm:$0xff] %v765
  %845 = vst [vmem:[%s3 + $0xd8] sm:$0xff] %v766
  %846 = vst [vmem:[%s3 + $0xe0] sm:$0xff] %v767
  %847 = vst [vmem:[%s3 + $0xe8] sm:$0xff] %v768
  %848 = vst [vmem:[%s3 + $0xf0] sm:$0xff] %v769
  %849 = vst [vmem:[%s3 + $0xf8] sm:$0xff] %v770
  %850 = vst [vmem:[%s3 + $0x100] sm:$0xff] %v771
  %851 = vst [vmem:[%s3 + $0x108] sm:$0xff] %v772
  %852 = vst [vmem:[%s3 + $0x110] sm:$0xff] %v773
  %853 = vst [vmem:[%s3 + $0x118] sm:$0xff] %v774
  %854 = vst [vmem:[%s3 + $0x120] sm:$0xff] %v775
  %855 = vst [vmem:[%s3 + $0x128] sm:$0xff] %v776
  %856 = vst [vmem:[%s3 + $0x130] sm:$0xff] %v777
  %857 = vst [vmem:[%s3 + $0x138] sm:$0xff] %v778
  %858 = vst [vmem:[%s3 + $0x140] sm:$0xff] %v779
  %859 = vst [vmem:[%s3 + $0x148] sm:$0xff] %v780
  %860 = vst [vmem:[%s3 + $0x150] sm:$0xff] %v781
  %861 = vst [vmem:[%s3 + $0x158] sm:$0xff] %v782
  %862 = vst [vmem:[%s3 + $0x160] sm:$0xff] %v783
  %863 = vst [vmem:[%s3 + $0x168] sm:$0xff] %v784
  %864 = vst [vmem:[%s3 + $0x170] sm:$0xff] %v785
  %865 = vst [vmem:[%s3 + $0x178] sm:$0xff] %v786
  %866 = vst [vmem:[%s3 + $0x180] sm:$0xff] %v787
  %867 = vst [vmem:[%s3 + $0x188] sm:$0xff] %v788
  %868 = vst [vmem:[%s3 + $0x190] sm:$0xff] %v789
  %869 = vst [vmem:[%s3 + $0x198] sm:$0xff] %v790
  %870 = vst [vmem:[%s3 + $0x1a0] sm:$0xff] %v791
  %871 = vst [vmem:[%s3 + $0x1a8] sm:$0xff] %v792
  %872 = vst [vmem:[%s3 + $0x1b0] sm:$0xff] %v793
  %873 = vst [vmem:[%s3 + $0x1b8] sm:$0xff] %v794
  %874 = vst [vmem:[%s3 + $0x1c0] sm:$0xff] %v795
  %875 = vst [vmem:[%s3 + $0x1c8] sm:$0xff] %v796
  %876 = vst [vmem:[%s3 + $0x1d0] sm:$0xff] %v797
  %877 = vst [vmem:[%s3 + $0x1d8] sm:$0xff] %v798
  %878 = vst [vmem:[%s3 + $0x1e0] sm:$0xff] %v799
  %879 = vst [vmem:[%s3 + $0x1e8] sm:$0xff] %v800
  %880 = vst [vmem:[%s3 + $0x1f0] sm:$0xff] %v801
  %881 = vst [vmem:[%s3 + $0x1f8] sm:$0xff] %v802
  %882 = vst [vmem:[%s3 + $0x200] sm:$0xff] %v803
  %883 = vst [vmem:[%s3 + $0x208] sm:$0xff] %v804
  %884 = vst [vmem:[%s3 + $0x210] sm:$0xff] %v805
  %885 = vst [vmem:[%s3 + $0x218] sm:$0xff] %v806
  %886 = vst [vmem:[%s3 + $0x220] sm:$0xff] %v807
  %887 = vst [vmem:[%s3 + $0x228] sm:$0xff] %v808
  %888 = vst [vmem:[%s3 + $0x230] sm:$0xff] %v809
  %889 = vst [vmem:[%s3 + $0x238] sm:$0xff] %v810
  %890 = vst [vmem:[%s3 + $0x240] sm:$0xff] %v811
  %891 = vst [vmem:[%s3 + $0x248] sm:$0xff] %v812
  %892 = vst [vmem:[%s3 + $0x250] sm:$0xff] %v813
  %893 = vst [vmem:[%s3 + $0x258] sm:$0xff] %v814
  %894 = vst [vmem:[%s3 + $0x260] sm:$0xff] %v815
  %895 = vst [vmem:[%s3 + $0x268] sm:$0xff] %v816
  %896 = vst [vmem:[%s3 + $0x270] sm:$0xff] %v817
  // Predicated region
  $region14: #{_lambda_.3} parent=0 // pred_check
    _
  $region15: #{_lambda_.3} parent=0 // pred_check_branch
    %898 = sbr.rel (0) target = $region17
  $region16: #{_lambda_.3} parent=0 // pred_region
    _
  $region17: #{_lambda_.3} parent=0 // pred_fallthru
    _
  // Predicated region
  $region18: #{_lambda_.3} parent=0 // pred_check
    _
  $region19: #{_lambda_.3} parent=0 // pred_check_branch
    %900 = sbr.rel (0) target = $region21
  $region20: #{_lambda_.3} parent=0 // pred_region
    _
  $region21: #{_lambda_.3} parent=0 // pred_fallthru
    _

// kernel: _lambda_.2
$region0: #{_lambda_.2}
  #allocation0 [shape = 'u32[]', space=smem, size = 0x4, offset = 0x4, fixed_abs, tag = 'smem constant byte address 0x4 - core index']
  #allocation1 [shape = 'u32[144,128]{1,0:T(1,128)}', space=vmem, size = 0x12000, scoped, tag = 'internal scratch']
  %s0 = inlined_call_operand.vmem [shape: bf16[632,128], index: 0, kind: input, shape index: {}]
  %s1 = inlined_call_operand.vmem [shape: bf16[128,128], index: 1, kind: input, shape index: {}]
  %s2 = inlined_call_operand.vmem [shape: f32[632,128], index: 2, kind: output, shape index: {0}]
  %s3 = inlined_call_operand.vmem [shape: f32[1,8,128], index: 3, kind: output, shape index: {1}]
  %s4 = inlined_call_operand.vmem [shape: f32[1,8,128], index: 4, kind: output, shape index: {2}]
  %5 = xla_tuple %s2, %s3, %s4
  %s6 = sld [smem:[#allocation0]]
  $region34: #{_lambda_.2} parent=0
    _
  %s8 = ssub.s32 1, %s6
  %s9 = scalar_select 0, %s8, %s6
  // Predicated region
  $region2: #{_lambda_.2} parent=0 // pred_check
    _
  $region3: #{_lambda_.2} parent=0 // pred_check_branch
    %11 = sbr.rel (0) target = $region5
  $region4: #{_lambda_.2} parent=0 // pred_region
    _
  $region5: #{_lambda_.2} parent=0 // pred_fallthru
    _
  // Predicated region
  $region6: #{_lambda_.2} parent=0 // pred_check
    _
  $region7: #{_lambda_.2} parent=0 // pred_check_branch
    %13 = sbr.rel (0) target = $region9
  $region8: #{_lambda_.2} parent=0 // pred_region
    _
  $region9: #{_lambda_.2} parent=0 // pred_fallthru
    _
  %v15 = vld [vmem:[%s0] sm:$0xf]
  %v16 = vld [vmem:[%s0 + $0x4] sm:$0xf]
  %v17 = vld [vmem:[%s0 + $0x8] sm:$0xf]
  %v18 = vld [vmem:[%s0 + $0xc] sm:$0xf]
  %v19 = vld [vmem:[%s0 + $0x10] sm:$0xf]
  %v20 = vld [vmem:[%s0 + $0x14] sm:$0xf]
  %v21 = vld [vmem:[%s0 + $0x18] sm:$0xf]
  %v22 = vld [vmem:[%s0 + $0x1c] sm:$0xf]
  %v23 = vld [vmem:[%s0 + $0x20] sm:$0xf]
  %v24 = vld [vmem:[%s0 + $0x24] sm:$0xf]
  %v25 = vld [vmem:[%s0 + $0x28] sm:$0xf]
  %v26 = vld [vmem:[%s0 + $0x2c] sm:$0xf]
  %v27 = vld [vmem:[%s0 + $0x30] sm:$0xf]
  %v28 = vld [vmem:[%s0 + $0x34] sm:$0xf]
  %v29 = vld [vmem:[%s0 + $0x38] sm:$0xf]
  %v30 = vld [vmem:[%s0 + $0x3c] sm:$0xf]
  %v31 = vld [vmem:[%s0 + $0x40] sm:$0xf]
  %v32 = vld [vmem:[%s0 + $0x44] sm:$0xf]
  %v33 = vld [vmem:[%s0 + $0x48] sm:$0xf]
  %v34 = vld [vmem:[%s0 + $0x4c] sm:$0xf]
  %v35 = vld [vmem:[%s0 + $0x50] sm:$0xf]
  %v36 = vld [vmem:[%s0 + $0x54] sm:$0xf]
  %v37 = vld [vmem:[%s0 + $0x58] sm:$0xf]
  %v38 = vld [vmem:[%s0 + $0x5c] sm:$0xf]
  %v39 = vld [vmem:[%s0 + $0x60] sm:$0xf]
  %v40 = vld [vmem:[%s0 + $0x64] sm:$0xf]
  %v41 = vld [vmem:[%s0 + $0x68] sm:$0xf]
  %v42 = vld [vmem:[%s0 + $0x6c] sm:$0xf]
  %v43 = vld [vmem:[%s0 + $0x70] sm:$0xf]
  %v44 = vld [vmem:[%s0 + $0x74] sm:$0xf]
  %v45 = vld [vmem:[%s0 + $0x78] sm:$0xf]
  %v46 = vld [vmem:[%s0 + $0x7c] sm:$0xf]
  %v47 = vld [vmem:[%s0 + $0x80] sm:$0xf]
  %v48 = vld [vmem:[%s0 + $0x84] sm:$0xf]
  %v49 = vld [vmem:[%s0 + $0x88] sm:$0xf]
  %v50 = vld [vmem:[%s0 + $0x8c] sm:$0xf]
  %v51 = vld [vmem:[%s0 + $0x90] sm:$0xf]
  %v52 = vld [vmem:[%s0 + $0x94] sm:$0xf]
  %v53 = vld [vmem:[%s0 + $0x98] sm:$0xf]
  %v54 = vld [vmem:[%s0 + $0x9c] sm:$0xf]
  %v55 = vld [vmem:[%s0 + $0xa0] sm:$0xf]
  %v56 = vld [vmem:[%s0 + $0xa4] sm:$0xf]
  %v57 = vld [vmem:[%s0 + $0xa8] sm:$0xf]
  %v58 = vld [vmem:[%s0 + $0xac] sm:$0xf]
  %v59 = vld [vmem:[%s0 + $0xb0] sm:$0xf]
  %v60 = vld [vmem:[%s0 + $0xb4] sm:$0xf]
  %v61 = vld [vmem:[%s0 + $0xb8] sm:$0xf]
  %v62 = vld [vmem:[%s0 + $0xbc] sm:$0xf]
  %v63 = vld [vmem:[%s0 + $0xc0] sm:$0xf]
  %v64 = vld [vmem:[%s0 + $0xc4] sm:$0xf]
  %v65 = vld [vmem:[%s0 + $0xc8] sm:$0xf]
  %v66 = vld [vmem:[%s0 + $0xcc] sm:$0xf]
  %v67 = vld [vmem:[%s0 + $0xd0] sm:$0xf]
  %v68 = vld [vmem:[%s0 + $0xd4] sm:$0xf]
  %v69 = vld [vmem:[%s0 + $0xd8] sm:$0xf]
  %v70 = vld [vmem:[%s0 + $0xdc] sm:$0xf]
  %v71 = vld [vmem:[%s0 + $0xe0] sm:$0xf]
  %v72 = vld [vmem:[%s0 + $0xe4] sm:$0xf]
  %v73 = vld [vmem:[%s0 + $0xe8] sm:$0xf]
  %v74 = vld [vmem:[%s0 + $0xec] sm:$0xf]
  %v75 = vld [vmem:[%s0 + $0xf0] sm:$0xf]
  %v76 = vld [vmem:[%s0 + $0xf4] sm:$0xf]
  %v77 = vld [vmem:[%s0 + $0xf8] sm:$0xf]
  %v78 = vld [vmem:[%s0 + $0xfc] sm:$0xf]
  %v79 = vld [vmem:[%s0 + $0x100] sm:$0xf]
  %v80 = vld [vmem:[%s0 + $0x104] sm:$0xf]
  %v81 = vld [vmem:[%s0 + $0x108] sm:$0xf]
  %v82 = vld [vmem:[%s0 + $0x10c] sm:$0xf]
  %v83 = vld [vmem:[%s0 + $0x110] sm:$0xf]
  %v84 = vld [vmem:[%s0 + $0x114] sm:$0xf]
  %v85 = vld [vmem:[%s0 + $0x118] sm:$0xf]
  %v86 = vld [vmem:[%s0 + $0x11c] sm:$0xf]
  %v87 = vld [vmem:[%s0 + $0x120] sm:$0xf]
  %v88 = vld [vmem:[%s0 + $0x124] sm:$0xf]
  %v89 = vld [vmem:[%s0 + $0x128] sm:$0xf]
  %v90 = vld [vmem:[%s0 + $0x12c] sm:$0xf]
  %v91 = vld [vmem:[%s0 + $0x130] sm:$0xf]
  %v92 = vld [vmem:[%s0 + $0x134] sm:$0xf]
  %v93 = vld [vmem:[%s0 + $0x138] sm:$0xf]
  %v94 = vld [vmem:[%s1] sm:$0xf]
  %v95 = vld [vmem:[%s1 + $0x4] sm:$0xf]
  %v96 = vld [vmem:[%s1 + $0x8] sm:$0xf]
  %v97 = vld [vmem:[%s1 + $0xc] sm:$0xf]
  %v98 = vld [vmem:[%s1 + $0x10] sm:$0xf]
  %v99 = vld [vmem:[%s1 + $0x14] sm:$0xf]
  %v100 = vld [vmem:[%s1 + $0x18] sm:$0xf]
  %v101 = vld [vmem:[%s1 + $0x1c] sm:$0xf]
  %v102 = vld [vmem:[%s1 + $0x20] sm:$0xf]
  %v103 = vld [vmem:[%s1 + $0x24] sm:$0xf]
  %v104 = vld [vmem:[%s1 + $0x28] sm:$0xf]
  %v105 = vld [vmem:[%s1 + $0x2c] sm:$0xf]
  %v106 = vld [vmem:[%s1 + $0x30] sm:$0xf]
  %v107 = vld [vmem:[%s1 + $0x34] sm:$0xf]
  %v108 = vld [vmem:[%s1 + $0x38] sm:$0xf]
  %v109 = vld [vmem:[%s1 + $0x3c] sm:$0xf]
  %v189 = vunpack.c.l.b16 %v15
  %v190 = vunpack.c.l.b16 %v16
  %v191 = vunpack.c.l.b16 %v17
  %v192 = vunpack.c.l.b16 %v18
  %v193 = vunpack.c.l.b16 %v19
  %v194 = vunpack.c.l.b16 %v20
  %v195 = vunpack.c.l.b16 %v21
  %v196 = vunpack.c.l.b16 %v22
  %v197 = vunpack.c.l.b16 %v23
  %v198 = vunpack.c.l.b16 %v24
  %v199 = vunpack.c.l.b16 %v25
  %v200 = vunpack.c.l.b16 %v26
  %v201 = vunpack.c.l.b16 %v27
  %v202 = vunpack.c.l.b16 %v28
  %v203 = vunpack.c.l.b16 %v29
  %v204 = vunpack.c.l.b16 %v30
  %v205 = vunpack.c.l.b16 %v31
  %v206 = vunpack.c.l.b16 %v32
  %v207 = vunpack.c.l.b16 %v33
  %v208 = vunpack.c.l.b16 %v34
  %v209 = vunpack.c.l.b16 %v35
  %v210 = vunpack.c.l.b16 %v36
  %v211 = vunpack.c.l.b16 %v37
  %v212 = vunpack.c.l.b16 %v38
  %v213 = vunpack.c.l.b16 %v39
  %v214 = vunpack.c.l.b16 %v40
  %v215 = vunpack.c.l.b16 %v41
  %v216 = vunpack.c.l.b16 %v42
  %v217 = vunpack.c.l.b16 %v43
  %v218 = vunpack.c.l.b16 %v44
  %v219 = vunpack.c.l.b16 %v45
  %v220 = vunpack.c.l.b16 %v46
  %v221 = vunpack.c.l.b16 %v47
  %v222 = vunpack.c.l.b16 %v48
  %v223 = vunpack.c.l.b16 %v49
  %v224 = vunpack.c.l.b16 %v50
  %v225 = vunpack.c.l.b16 %v51
  %v226 = vunpack.c.l.b16 %v52
  %v227 = vunpack.c.l.b16 %v53
  %v228 = vunpack.c.l.b16 %v54
  %v229 = vunpack.c.l.b16 %v55
  %v230 = vunpack.c.l.b16 %v56
  %v231 = vunpack.c.l.b16 %v57
  %v232 = vunpack.c.l.b16 %v58
  %v233 = vunpack.c.l.b16 %v59
  %v234 = vunpack.c.l.b16 %v60
  %v235 = vunpack.c.l.b16 %v61
  %v236 = vunpack.c.l.b16 %v62
  %v237 = vunpack.c.l.b16 %v63
  %v238 = vunpack.c.l.b16 %v64
  %v239 = vunpack.c.l.b16 %v65
  %v240 = vunpack.c.l.b16 %v66
  %v241 = vunpack.c.l.b16 %v67
  %v242 = vunpack.c.l.b16 %v68
  %v243 = vunpack.c.l.b16 %v69
  %v244 = vunpack.c.l.b16 %v70
  %v245 = vunpack.c.l.b16 %v71
  %v246 = vunpack.c.l.b16 %v72
  %v247 = vunpack.c.l.b16 %v73
  %v248 = vunpack.c.l.b16 %v74
  %v249 = vunpack.c.l.b16 %v75
  %v250 = vunpack.c.l.b16 %v76
  %v251 = vunpack.c.l.b16 %v77
  %v252 = vunpack.c.l.b16 %v78
  %v253 = vunpack.c.l.b16 %v79
  %v254 = vunpack.c.l.b16 %v80
  %v255 = vunpack.c.l.b16 %v81
  %v256 = vunpack.c.l.b16 %v82
  %v257 = vunpack.c.l.b16 %v83
  %v258 = vunpack.c.l.b16 %v84
  %v259 = vunpack.c.l.b16 %v85
  %v260 = vunpack.c.l.b16 %v86
  %v261 = vunpack.c.l.b16 %v87
  %v262 = vunpack.c.l.b16 %v88
  %v263 = vunpack.c.l.b16 %v89
  %v264 = vunpack.c.l.b16 %v90
  %v265 = vunpack.c.l.b16 %v91
  %v266 = vunpack.c.l.b16 %v92
  %v267 = vunpack.c.l.b16 %v93
  %v268 = vpack.c.b16 %v190, %v189
  %v269 = vpack.c.b16 %v192, %v191
  %v270 = vpack.c.b16 %v194, %v193
  %v271 = vpack.c.b16 %v196, %v195
  %v272 = vpack.c.b16 %v198, %v197
  %v273 = vpack.c.b16 %v200, %v199
  %v274 = vpack.c.b16 %v202, %v201
  %v275 = vpack.c.b16 %v204, %v203
  %v276 = vpack.c.b16 %v206, %v205
  %v277 = vpack.c.b16 %v208, %v207
  %v278 = vpack.c.b16 %v210, %v209
  %v279 = vpack.c.b16 %v212, %v211
  %v280 = vpack.c.b16 %v214, %v213
  %v281 = vpack.c.b16 %v216, %v215
  %v282 = vpack.c.b16 %v218, %v217
  %v283 = vpack.c.b16 %v220, %v219
  %v284 = vpack.c.b16 %v222, %v221
  %v285 = vpack.c.b16 %v224, %v223
  %v286 = vpack.c.b16 %v226, %v225
  %v287 = vpack.c.b16 %v228, %v227
  %v288 = vpack.c.b16 %v230, %v229
  %v289 = vpack.c.b16 %v232, %v231
  %v290 = vpack.c.b16 %v234, %v233
  %v291 = vpack.c.b16 %v236, %v235
  %v292 = vpack.c.b16 %v238, %v237
  %v293 = vpack.c.b16 %v240, %v239
  %v294 = vpack.c.b16 %v242, %v241
  %v295 = vpack.c.b16 %v244, %v243
  %v296 = vpack.c.b16 %v246, %v245
  %v297 = vpack.c.b16 %v248, %v247
  %v298 = vpack.c.b16 %v250, %v249
  %v299 = vpack.c.b16 %v252, %v251
  %v300 = vpack.c.b16 %v254, %v253
  %v301 = vpack.c.b16 %v256, %v255
  %v302 = vpack.c.b16 %v258, %v257
  %v303 = vpack.c.b16 %v260, %v259
  %v304 = vpack.c.b16 %v262, %v261
  %v305 = vpack.c.b16 %v264, %v263
  %v306 = vpack.c.b16 %v266, %v265
  %v307 = vpack.c.b16 %v267, %v267
  %v364 = vunpack.c.l.b16 %v94
  %v365 = vunpack.c.l.b16 %v95
  %v366 = vunpack.c.l.b16 %v96
  %v367 = vunpack.c.l.b16 %v97
  %v368 = vunpack.c.l.b16 %v98
  %v369 = vunpack.c.l.b16 %v99
  %v370 = vunpack.c.l.b16 %v100
  %v371 = vunpack.c.l.b16 %v101
  %v372 = vunpack.c.l.b16 %v102
  %v373 = vunpack.c.l.b16 %v103
  %v374 = vunpack.c.l.b16 %v104
  %v375 = vunpack.c.l.b16 %v105
  %v376 = vunpack.c.l.b16 %v106
  %v377 = vunpack.c.l.b16 %v107
  %v378 = vunpack.c.l.b16 %v108
  %v379 = vunpack.c.l.b16 %v109
  %v380 = vpack.c.b16 %v365, %v364
  %v381 = vpack.c.b16 %v367, %v366
  %v382 = vpack.c.b16 %v369, %v368
  %v383 = vpack.c.b16 %v371, %v370
  %v384 = vpack.c.b16 %v373, %v372
  %v385 = vpack.c.b16 %v375, %v374
  %v386 = vpack.c.b16 %v377, %v376
  %v387 = vpack.c.b16 %v379, %v378
  %396 = vmatprep.subr.bf16.mxu0 0
  %397 = vmatpush1.bf16.msra.mxu0 %v387
  %398 = vmatprep.subr.bf16.mxu0 0
  %399 = vmatpush1.bf16.msra.mxu0 %v386
  %400 = vmatprep.subr.bf16.mxu0 0
  %401 = vmatpush1.bf16.msra.mxu0 %v385
  %402 = vmatprep.subr.bf16.mxu0 0
  %403 = vmatpush1.bf16.msra.mxu0 %v384
  %404 = vmatprep.subr.bf16.mxu0 0
  %405 = vmatpush1.bf16.msra.mxu0 %v383
  %406 = vmatprep.subr.bf16.mxu0 0
  %407 = vmatpush1.bf16.msra.mxu0 %v382
  %408 = vmatprep.subr.bf16.mxu0 0
  %409 = vmatpush1.bf16.msra.mxu0 %v381
  %410 = vmatprep.subr.bf16.mxu0 0
  %411 = vmatpush1.bf16.msra.mxu0 %v380
  %412 = vmatprep.subr.bf16.mxu0 0
  %413 = vmatpush2.bf16.msra.mxu0 0
  %414 = vmatprep.subr.bf16.mxu0 0
  %415 = vmatpush2.bf16.msra.mxu0 0
  %416 = vmatprep.subr.bf16.mxu0 0
  %417 = vmatpush2.bf16.msra.mxu0 0
  %418 = vmatprep.subr.bf16.mxu0 0
  %419 = vmatpush2.bf16.msra.mxu0 0
  %420 = vmatprep.subr.bf16.mxu0 0
  %421 = vmatpush2.bf16.msra.mxu0 0
  %422 = vmatprep.subr.bf16.mxu0 0
  %423 = vmatpush2.bf16.msra.mxu0 0
  %424 = vmatprep.subr.bf16.mxu0 0
  %425 = vmatpush2.bf16.msra.mxu0 0
  %426 = vmatprep.subr.bf16.mxu0 0
  %427 = vmatpush2.bf16.msra.mxu0 0
  %428 = vmatprep.mubr.bf16.mxu0 0
  %429 = vmatmul.mubr.bf16.gmra.mxu0 %v268
  %v430 = vpop.f32.mrf.mxu0
  %v431 = vadd.f32 0.0, %v430
  %v432 = vpop.f32.mrf.mxu0
  %v433 = vpop.f32.mrf.mxu0
  %v434 = vadd.f32 0.0, %v433
  %v435 = vpop.f32.mrf.mxu0
  %436 = vmatprep.mubr.bf16.mxu0 0
  %437 = vmatmul.mubr.bf16.gmra.mxu0 %v269
  %v438 = vpop.f32.mrf.mxu0
  %v439 = vadd.f32 0.0, %v438
  %v440 = vpop.f32.mrf.mxu0
  %v441 = vpop.f32.mrf.mxu0
  %v442 = vadd.f32 0.0, %v441
  %v443 = vpop.f32.mrf.mxu0
  %444 = vmatprep.mubr.bf16.mxu0 0
  %445 = vmatmul.mubr.bf16.gmra.mxu0 %v270
  %v446 = vpop.f32.mrf.mxu0
  %v447 = vadd.f32 0.0, %v446
  %v448 = vpop.f32.mrf.mxu0
  %v449 = vpop.f32.mrf.mxu0
  %v450 = vadd.f32 0.0, %v449
  %v451 = vpop.f32.mrf.mxu0
  %452 = vmatprep.mubr.bf16.mxu0 0
  %453 = vmatmul.mubr.bf16.gmra.mxu0 %v271
  %v454 = vpop.f32.mrf.mxu0
  %v455 = vadd.f32 0.0, %v454
  %v456 = vpop.f32.mrf.mxu0
  %v457 = vpop.f32.mrf.mxu0
  %v458 = vadd.f32 0.0, %v457
  %v459 = vpop.f32.mrf.mxu0
  %460 = vmatprep.mubr.bf16.mxu0 0
  %461 = vmatmul.mubr.bf16.gmra.mxu0 %v272
  %v462 = vpop.f32.mrf.mxu0
  %v463 = vadd.f32 0.0, %v462
  %v464 = vpop.f32.mrf.mxu0
  %v465 = vpop.f32.mrf.mxu0
  %v466 = vadd.f32 0.0, %v465
  %v467 = vpop.f32.mrf.mxu0
  %468 = vmatprep.mubr.bf16.mxu0 0
  %469 = vmatmul.mubr.bf16.gmra.mxu0 %v273
  %v470 = vpop.f32.mrf.mxu0
  %v471 = vadd.f32 0.0, %v470
  %v472 = vpop.f32.mrf.mxu0
  %v473 = vpop.f32.mrf.mxu0
  %v474 = vadd.f32 0.0, %v473
  %v475 = vpop.f32.mrf.mxu0
  %476 = vmatprep.mubr.bf16.mxu0 0
  %477 = vmatmul.mubr.bf16.gmra.mxu0 %v274
  %v478 = vpop.f32.mrf.mxu0
  %v479 = vadd.f32 0.0, %v478
  %v480 = vpop.f32.mrf.mxu0
  %v481 = vpop.f32.mrf.mxu0
  %v482 = vadd.f32 0.0, %v481
  %v483 = vpop.f32.mrf.mxu0
  %484 = vmatprep.mubr.bf16.mxu0 0
  %485 = vmatmul.mubr.bf16.gmra.mxu0 %v275
  %v486 = vpop.f32.mrf.mxu0
  %v487 = vadd.f32 0.0, %v486
  %v488 = vpop.f32.mrf.mxu0
  %v489 = vpop.f32.mrf.mxu0
  %v490 = vadd.f32 0.0, %v489
  %v491 = vpop.f32.mrf.mxu0
  %492 = vmatprep.mubr.bf16.mxu0 0
  %493 = vmatmul.mubr.bf16.gmra.mxu0 %v276
  %v494 = vpop.f32.mrf.mxu0
  %v495 = vadd.f32 0.0, %v494
  %v496 = vpop.f32.mrf.mxu0
  %v497 = vpop.f32.mrf.mxu0
  %v498 = vadd.f32 0.0, %v497
  %v499 = vpop.f32.mrf.mxu0
  %500 = vmatprep.mubr.bf16.mxu0 0
  %501 = vmatmul.mubr.bf16.gmra.mxu0 %v277
  %v502 = vpop.f32.mrf.mxu0
  %v503 = vadd.f32 0.0, %v502
  %v504 = vpop.f32.mrf.mxu0
  %v505 = vpop.f32.mrf.mxu0
  %v506 = vadd.f32 0.0, %v505
  %v507 = vpop.f32.mrf.mxu0
  %508 = vmatprep.mubr.bf16.mxu0 0
  %509 = vmatmul.mubr.bf16.gmra.mxu0 %v278
  %v510 = vpop.f32.mrf.mxu0
  %v511 = vadd.f32 0.0, %v510
  %v512 = vpop.f32.mrf.mxu0
  %v513 = vpop.f32.mrf.mxu0
  %v514 = vadd.f32 0.0, %v513
  %v515 = vpop.f32.mrf.mxu0
  %516 = vmatprep.mubr.bf16.mxu0 0
  %517 = vmatmul.mubr.bf16.gmra.mxu0 %v279
  %v518 = vpop.f32.mrf.mxu0
  %v519 = vadd.f32 0.0, %v518
  %v520 = vpop.f32.mrf.mxu0
  %v521 = vpop.f32.mrf.mxu0
  %v522 = vadd.f32 0.0, %v521
  %v523 = vpop.f32.mrf.mxu0
  %524 = vmatprep.mubr.bf16.mxu0 0
  %525 = vmatmul.mubr.bf16.gmra.mxu0 %v280
  %v526 = vpop.f32.mrf.mxu0
  %v527 = vadd.f32 0.0, %v526
  %v528 = vpop.f32.mrf.mxu0
  %v529 = vpop.f32.mrf.mxu0
  %v530 = vadd.f32 0.0, %v529
  %v531 = vpop.f32.mrf.mxu0
  %532 = vmatprep.mubr.bf16.mxu0 0
  %533 = vmatmul.mubr.bf16.gmra.mxu0 %v281
  %v534 = vpop.f32.mrf.mxu0
  %v535 = vadd.f32 0.0, %v534
  %v536 = vpop.f32.mrf.mxu0
  %v537 = vpop.f32.mrf.mxu0
  %v538 = vadd.f32 0.0, %v537
  %v539 = vpop.f32.mrf.mxu0
  %540 = vmatprep.mubr.bf16.mxu0 0
  %541 = vmatmul.mubr.bf16.gmra.mxu0 %v282
  %v542 = vpop.f32.mrf.mxu0
  %v543 = vadd.f32 0.0, %v542
  %v544 = vpop.f32.mrf.mxu0
  %v545 = vpop.f32.mrf.mxu0
  %v546 = vadd.f32 0.0, %v545
  %v547 = vpop.f32.mrf.mxu0
  %548 = vmatprep.mubr.bf16.mxu0 0
  %549 = vmatmul.mubr.bf16.gmra.mxu0 %v283
  %v550 = vpop.f32.mrf.mxu0
  %v551 = vadd.f32 0.0, %v550
  %v552 = vpop.f32.mrf.mxu0
  %v553 = vpop.f32.mrf.mxu0
  %v554 = vadd.f32 0.0, %v553
  %v555 = vpop.f32.mrf.mxu0
  %556 = vmatprep.mubr.bf16.mxu0 0
  %557 = vmatmul.mubr.bf16.gmra.mxu0 %v284
  %v558 = vpop.f32.mrf.mxu0
  %v559 = vadd.f32 0.0, %v558
  %v560 = vpop.f32.mrf.mxu0
  %v561 = vpop.f32.mrf.mxu0
  %v562 = vadd.f32 0.0, %v561
  %v563 = vpop.f32.mrf.mxu0
  %564 = vmatprep.mubr.bf16.mxu0 0
  %565 = vmatmul.mubr.bf16.gmra.mxu0 %v285
  %v566 = vpop.f32.mrf.mxu0
  %v567 = vadd.f32 0.0, %v566
  %v568 = vpop.f32.mrf.mxu0
  %v569 = vpop.f32.mrf.mxu0
  %v570 = vadd.f32 0.0, %v569
  %v571 = vpop.f32.mrf.mxu0
  %572 = vmatprep.mubr.bf16.mxu0 0
  %573 = vmatmul.mubr.bf16.gmra.mxu0 %v286
  %v574 = vpop.f32.mrf.mxu0
  %v575 = vadd.f32 0.0, %v574
  %v576 = vpop.f32.mrf.mxu0
  %v577 = vpop.f32.mrf.mxu0
  %v578 = vadd.f32 0.0, %v577
  %v579 = vpop.f32.mrf.mxu0
  %580 = vmatprep.mubr.bf16.mxu0 0
  %581 = vmatmul.mubr.bf16.gmra.mxu0 %v287
  %v582 = vpop.f32.mrf.mxu0
  %v583 = vadd.f32 0.0, %v582
  %v584 = vpop.f32.mrf.mxu0
  %v585 = vpop.f32.mrf.mxu0
  %v586 = vadd.f32 0.0, %v585
  %v587 = vpop.f32.mrf.mxu0
  %588 = vmatprep.mubr.bf16.mxu0 0
  %589 = vmatmul.mubr.bf16.gmra.mxu0 %v288
  %v590 = vpop.f32.mrf.mxu0
  %v591 = vadd.f32 0.0, %v590
  %v592 = vpop.f32.mrf.mxu0
  %v593 = vpop.f32.mrf.mxu0
  %v594 = vadd.f32 0.0, %v593
  %v595 = vpop.f32.mrf.mxu0
  %596 = vmatprep.mubr.bf16.mxu0 0
  %597 = vmatmul.mubr.bf16.gmra.mxu0 %v289
  %v598 = vpop.f32.mrf.mxu0
  %v599 = vadd.f32 0.0, %v598
  %v600 = vpop.f32.mrf.mxu0
  %v601 = vpop.f32.mrf.mxu0
  %v602 = vadd.f32 0.0, %v601
  %v603 = vpop.f32.mrf.mxu0
  %604 = vmatprep.mubr.bf16.mxu0 0
  %605 = vmatmul.mubr.bf16.gmra.mxu0 %v290
  %v606 = vpop.f32.mrf.mxu0
  %v607 = vadd.f32 0.0, %v606
  %v608 = vpop.f32.mrf.mxu0
  %v609 = vpop.f32.mrf.mxu0
  %v610 = vadd.f32 0.0, %v609
  %v611 = vpop.f32.mrf.mxu0
  %612 = vmatprep.mubr.bf16.mxu0 0
  %613 = vmatmul.mubr.bf16.gmra.mxu0 %v291
  %v614 = vpop.f32.mrf.mxu0
  %v615 = vadd.f32 0.0, %v614
  %v616 = vpop.f32.mrf.mxu0
  %v617 = vpop.f32.mrf.mxu0
  %v618 = vadd.f32 0.0, %v617
  %v619 = vpop.f32.mrf.mxu0
  %620 = vmatprep.mubr.bf16.mxu0 0
  %621 = vmatmul.mubr.bf16.gmra.mxu0 %v292
  %v622 = vpop.f32.mrf.mxu0
  %v623 = vadd.f32 0.0, %v622
  %v624 = vpop.f32.mrf.mxu0
  %v625 = vpop.f32.mrf.mxu0
  %v626 = vadd.f32 0.0, %v625
  %v627 = vpop.f32.mrf.mxu0
  %628 = vmatprep.mubr.bf16.mxu0 0
  %629 = vmatmul.mubr.bf16.gmra.mxu0 %v293
  %v630 = vpop.f32.mrf.mxu0
  %v631 = vadd.f32 0.0, %v630
  %v632 = vpop.f32.mrf.mxu0
  %v633 = vpop.f32.mrf.mxu0
  %v634 = vadd.f32 0.0, %v633
  %v635 = vpop.f32.mrf.mxu0
  %636 = vmatprep.mubr.bf16.mxu0 0
  %637 = vmatmul.mubr.bf16.gmra.mxu0 %v294
  %v638 = vpop.f32.mrf.mxu0
  %v639 = vadd.f32 0.0, %v638
  %v640 = vpop.f32.mrf.mxu0
  %v641 = vpop.f32.mrf.mxu0
  %v642 = vadd.f32 0.0, %v641
  %v643 = vpop.f32.mrf.mxu0
  %644 = vmatprep.mubr.bf16.mxu0 0
  %645 = vmatmul.mubr.bf16.gmra.mxu0 %v295
  %v646 = vpop.f32.mrf.mxu0
  %v647 = vadd.f32 0.0, %v646
  %v648 = vpop.f32.mrf.mxu0
  %v649 = vpop.f32.mrf.mxu0
  %v650 = vadd.f32 0.0, %v649
  %v651 = vpop.f32.mrf.mxu0
  %652 = vmatprep.mubr.bf16.mxu0 0
  %653 = vmatmul.mubr.bf16.gmra.mxu0 %v296
  %v654 = vpop.f32.mrf.mxu0
  %v655 = vadd.f32 0.0, %v654
  %v656 = vpop.f32.mrf.mxu0
  %v657 = vpop.f32.mrf.mxu0
  %v658 = vadd.f32 0.0, %v657
  %v659 = vpop.f32.mrf.mxu0
  %660 = vmatprep.mubr.bf16.mxu0 0
  %661 = vmatmul.mubr.bf16.gmra.mxu0 %v297
  %v662 = vpop.f32.mrf.mxu0
  %v663 = vadd.f32 0.0, %v662
  %v664 = vpop.f32.mrf.mxu0
  %v665 = vpop.f32.mrf.mxu0
  %v666 = vadd.f32 0.0, %v665
  %v667 = vpop.f32.mrf.mxu0
  %668 = vmatprep.mubr.bf16.mxu0 0
  %669 = vmatmul.mubr.bf16.gmra.mxu0 %v298
  %v670 = vpop.f32.mrf.mxu0
  %v671 = vadd.f32 0.0, %v670
  %v672 = vpop.f32.mrf.mxu0
  %v673 = vpop.f32.mrf.mxu0
  %v674 = vadd.f32 0.0, %v673
  %v675 = vpop.f32.mrf.mxu0
  %676 = vmatprep.mubr.bf16.mxu0 0
  %677 = vmatmul.mubr.bf16.gmra.mxu0 %v299
  %v678 = vpop.f32.mrf.mxu0
  %v679 = vadd.f32 0.0, %v678
  %v680 = vpop.f32.mrf.mxu0
  %v681 = vpop.f32.mrf.mxu0
  %v682 = vadd.f32 0.0, %v681
  %v683 = vpop.f32.mrf.mxu0
  %684 = vmatprep.mubr.bf16.mxu0 0
  %685 = vmatmul.mubr.bf16.gmra.mxu0 %v300
  %v686 = vpop.f32.mrf.mxu0
  %v687 = vadd.f32 0.0, %v686
  %v688 = vpop.f32.mrf.mxu0
  %v689 = vpop.f32.mrf.mxu0
  %v690 = vadd.f32 0.0, %v689
  %v691 = vpop.f32.mrf.mxu0
  %692 = vmatprep.mubr.bf16.mxu0 0
  %693 = vmatmul.mubr.bf16.gmra.mxu0 %v301
  %v694 = vpop.f32.mrf.mxu0
  %v695 = vadd.f32 0.0, %v694
  %v696 = vpop.f32.mrf.mxu0
  %v697 = vpop.f32.mrf.mxu0
  %v698 = vadd.f32 0.0, %v697
  %v699 = vpop.f32.mrf.mxu0
  %700 = vmatprep.mubr.bf16.mxu0 0
  %701 = vmatmul.mubr.bf16.gmra.mxu0 %v302
  %v702 = vpop.f32.mrf.mxu0
  %v703 = vadd.f32 0.0, %v702
  %v704 = vpop.f32.mrf.mxu0
  %v705 = vpop.f32.mrf.mxu0
  %v706 = vadd.f32 0.0, %v705
  %v707 = vpop.f32.mrf.mxu0
  %708 = vmatprep.mubr.bf16.mxu0 0
  %709 = vmatmul.mubr.bf16.gmra.mxu0 %v303
  %v710 = vpop.f32.mrf.mxu0
  %v711 = vadd.f32 0.0, %v710
  %v712 = vpop.f32.mrf.mxu0
  %v713 = vpop.f32.mrf.mxu0
  %v714 = vadd.f32 0.0, %v713
  %v715 = vpop.f32.mrf.mxu0
  %716 = vmatprep.mubr.bf16.mxu0 0
  %717 = vmatmul.mubr.bf16.gmra.mxu0 %v304
  %v718 = vpop.f32.mrf.mxu0
  %v719 = vadd.f32 0.0, %v718
  %v720 = vpop.f32.mrf.mxu0
  %v721 = vpop.f32.mrf.mxu0
  %v722 = vadd.f32 0.0, %v721
  %v723 = vpop.f32.mrf.mxu0
  %724 = vmatprep.mubr.bf16.mxu0 0
  %725 = vmatmul.mubr.bf16.gmra.mxu0 %v305
  %v726 = vpop.f32.mrf.mxu0
  %v727 = vadd.f32 0.0, %v726
  %v728 = vpop.f32.mrf.mxu0
  %v729 = vpop.f32.mrf.mxu0
  %v730 = vadd.f32 0.0, %v729
  %v731 = vpop.f32.mrf.mxu0
  %732 = vmatprep.mubr.bf16.mxu0 0
  %733 = vmatmul.mubr.bf16.gmra.mxu0 %v306
  %v734 = vpop.f32.mrf.mxu0
  %v735 = vadd.f32 0.0, %v734
  %v736 = vpop.f32.mrf.mxu0
  %v737 = vpop.f32.mrf.mxu0
  %v738 = vadd.f32 0.0, %v737
  %v739 = vpop.f32.mrf.mxu0
  %740 = vmatprep.mubr.bf16.mxu0 0
  %741 = vmatmul.mubr.bf16.gmra.mxu0 %v307
  %v742 = vpop.f32.mrf.mxu0
  %v743 = vadd.f32 0.0, %v742
  %v744 = vpop.f32.mrf.mxu0
  %v745 = vpop.f32.mrf.mxu0
  %v746 = vpop.f32.mrf.mxu0
  %747 = vdwg.mxu0
  %748 = vst [vmem:[%s2] sm:$0xff] %v431
  %749 = vst [vmem:[%s2 + $0x8] sm:$0xff] %v434
  %750 = vst [vmem:[%s2 + $0x10] sm:$0xff] %v439
  %751 = vst [vmem:[%s2 + $0x18] sm:$0xff] %v442
  %752 = vst [vmem:[%s2 + $0x20] sm:$0xff] %v447
  %753 = vst [vmem:[%s2 + $0x28] sm:$0xff] %v450
  %754 = vst [vmem:[%s2 + $0x30] sm:$0xff] %v455
  %755 = vst [vmem:[%s2 + $0x38] sm:$0xff] %v458
  %756 = vst [vmem:[%s2 + $0x40] sm:$0xff] %v463
  %757 = vst [vmem:[%s2 + $0x48] sm:$0xff] %v466
  %758 = vst [vmem:[%s2 + $0x50] sm:$0xff] %v471
  %759 = vst [vmem:[%s2 + $0x58] sm:$0xff] %v474
  %760 = vst [vmem:[%s2 + $0x60] sm:$0xff] %v479
  %761 = vst [vmem:[%s2 + $0x68] sm:$0xff] %v482
  %762 = vst [vmem:[%s2 + $0x70] sm:$0xff] %v487
  %763 = vst [vmem:[%s2 + $0x78] sm:$0xff] %v490
  %764 = vst [vmem:[%s2 + $0x80] sm:$0xff] %v495
  %765 = vst [vmem:[%s2 + $0x88] sm:$0xff] %v498
  %766 = vst [vmem:[%s2 + $0x90] sm:$0xff] %v503
  %767 = vst [vmem:[%s2 + $0x98] sm:$0xff] %v506
  %768 = vst [vmem:[%s2 + $0xa0] sm:$0xff] %v511
  %769 = vst [vmem:[%s2 + $0xa8] sm:$0xff] %v514
  %770 = vst [vmem:[%s2 + $0xb0] sm:$0xff] %v519
  %771 = vst [vmem:[%s2 + $0xb8] sm:$0xff] %v522
  %772 = vst [vmem:[%s2 + $0xc0] sm:$0xff] %v527
  %773 = vst [vmem:[%s2 + $0xc8] sm:$0xff] %v530
  %774 = vst [vmem:[%s2 + $0xd0] sm:$0xff] %v535
  %775 = vst [vmem:[%s2 + $0xd8] sm:$0xff] %v538
  %776 = vst [vmem:[%s2 + $0xe0] sm:$0xff] %v543
  %777 = vst [vmem:[%s2 + $0xe8] sm:$0xff] %v546
  %778 = vst [vmem:[%s2 + $0xf0] sm:$0xff] %v551
  %779 = vst [vmem:[%s2 + $0xf8] sm:$0xff] %v554
  %780 = vst [vmem:[%s2 + $0x100] sm:$0xff] %v559
  %781 = vst [vmem:[%s2 + $0x108] sm:$0xff] %v562
  %782 = vst [vmem:[%s2 + $0x110] sm:$0xff] %v567
  %783 = vst [vmem:[%s2 + $0x118] sm:$0xff] %v570
  %784 = vst [vmem:[%s2 + $0x120] sm:$0xff] %v575
  %785 = vst [vmem:[%s2 + $0x128] sm:$0xff] %v578
  %786 = vst [vmem:[%s2 + $0x130] sm:$0xff] %v583
  %787 = vst [vmem:[%s2 + $0x138] sm:$0xff] %v586
  %788 = vst [vmem:[%s2 + $0x140] sm:$0xff] %v591
  %789 = vst [vmem:[%s2 + $0x148] sm:$0xff] %v594
  %790 = vst [vmem:[%s2 + $0x150] sm:$0xff] %v599
  %791 = vst [vmem:[%s2 + $0x158] sm:$0xff] %v602
  %792 = vst [vmem:[%s2 + $0x160] sm:$0xff] %v607
  %793 = vst [vmem:[%s2 + $0x168] sm:$0xff] %v610
  %794 = vst [vmem:[%s2 + $0x170] sm:$0xff] %v615
  %795 = vst [vmem:[%s2 + $0x178] sm:$0xff] %v618
  %796 = vst [vmem:[%s2 + $0x180] sm:$0xff] %v623
  %797 = vst [vmem:[%s2 + $0x188] sm:$0xff] %v626
  %798 = vst [vmem:[%s2 + $0x190] sm:$0xff] %v631
  %799 = vst [vmem:[%s2 + $0x198] sm:$0xff] %v634
  %800 = vst [vmem:[%s2 + $0x1a0] sm:$0xff] %v639
  %801 = vst [vmem:[%s2 + $0x1a8] sm:$0xff] %v642
  %802 = vst [vmem:[%s2 + $0x1b0] sm:$0xff] %v647
  %803 = vst [vmem:[%s2 + $0x1b8] sm:$0xff] %v650
  %804 = vst [vmem:[%s2 + $0x1c0] sm:$0xff] %v655
  %805 = vst [vmem:[%s2 + $0x1c8] sm:$0xff] %v658
  %806 = vst [vmem:[%s2 + $0x1d0] sm:$0xff] %v663
  %807 = vst [vmem:[%s2 + $0x1d8] sm:$0xff] %v666
  %808 = vst [vmem:[%s2 + $0x1e0] sm:$0xff] %v671
  %809 = vst [vmem:[%s2 + $0x1e8] sm:$0xff] %v674
  %810 = vst [vmem:[%s2 + $0x1f0] sm:$0xff] %v679
  %811 = vst [vmem:[%s2 + $0x1f8] sm:$0xff] %v682
  %812 = vst [vmem:[%s2 + $0x200] sm:$0xff] %v687
  %813 = vst [vmem:[%s2 + $0x208] sm:$0xff] %v690
  %814 = vst [vmem:[%s2 + $0x210] sm:$0xff] %v695
  %815 = vst [vmem:[%s2 + $0x218] sm:$0xff] %v698
  %816 = vst [vmem:[%s2 + $0x220] sm:$0xff] %v703
  %817 = vst [vmem:[%s2 + $0x228] sm:$0xff] %v706
  %818 = vst [vmem:[%s2 + $0x230] sm:$0xff] %v711
  %819 = vst [vmem:[%s2 + $0x238] sm:$0xff] %v714
  %820 = vst [vmem:[%s2 + $0x240] sm:$0xff] %v719
  %821 = vst [vmem:[%s2 + $0x248] sm:$0xff] %v722
  %822 = vst [vmem:[%s2 + $0x250] sm:$0xff] %v727
  %823 = vst [vmem:[%s2 + $0x258] sm:$0xff] %v730
  %824 = vst [vmem:[%s2 + $0x260] sm:$0xff] %v735
  %825 = vst [vmem:[%s2 + $0x268] sm:$0xff] %v738
  %826 = vst [vmem:[%s2 + $0x270] sm:$0xff] %v743
  %v827 = vadd.f32 %v431, %v434
  %v828 = vadd.f32 %v827, %v439
  %v829 = vadd.f32 %v828, %v442
  %v830 = vadd.f32 %v829, %v447
  %v831 = vadd.f32 %v830, %v450
  %v832 = vadd.f32 %v831, %v455
  %v833 = vadd.f32 %v832, %v458
  %v834 = vadd.f32 %v833, %v463
  %v835 = vadd.f32 %v834, %v466
  %v836 = vadd.f32 %v835, %v471
  %v837 = vadd.f32 %v836, %v474
  %v838 = vadd.f32 %v837, %v479
  %v839 = vadd.f32 %v838, %v482
  %v840 = vadd.f32 %v839, %v487
  %v841 = vadd.f32 %v840, %v490
  %v842 = vadd.f32 %v841, %v495
  %v843 = vadd.f32 %v842, %v498
  %v844 = vadd.f32 %v843, %v503
  %v845 = vadd.f32 %v844, %v506
  %v846 = vadd.f32 %v845, %v511
  %v847 = vadd.f32 %v846, %v514
  %v848 = vadd.f32 %v847, %v519
  %v849 = vadd.f32 %v848, %v522
  %v850 = vadd.f32 %v849, %v527
  %v851 = vadd.f32 %v850, %v530
  %v852 = vadd.f32 %v851, %v535
  %v853 = vadd.f32 %v852, %v538
  %v854 = vadd.f32 %v853, %v543
  %v855 = vadd.f32 %v854, %v546
  %v856 = vadd.f32 %v855, %v551
  %v857 = vadd.f32 %v856, %v554
  %v858 = vadd.f32 %v857, %v559
  %v859 = vadd.f32 %v858, %v562
  %v860 = vadd.f32 %v859, %v567
  %v861 = vadd.f32 %v860, %v570
  %v862 = vadd.f32 %v861, %v575
  %v863 = vadd.f32 %v862, %v578
  %v864 = vadd.f32 %v863, %v583
  %v865 = vadd.f32 %v864, %v586
  %v866 = vadd.f32 %v865, %v591
  %v867 = vadd.f32 %v866, %v594
  %v868 = vadd.f32 %v867, %v599
  %v869 = vadd.f32 %v868, %v602
  %v870 = vadd.f32 %v869, %v607
  %v871 = vadd.f32 %v870, %v610
  %v872 = vadd.f32 %v871, %v615
  %v873 = vadd.f32 %v872, %v618
  %v874 = vadd.f32 %v873, %v623
  %v875 = vadd.f32 %v874, %v626
  %v876 = vadd.f32 %v875, %v631
  %v877 = vadd.f32 %v876, %v634
  %v878 = vadd.f32 %v877, %v639
  %v879 = vadd.f32 %v878, %v642
  %v880 = vadd.f32 %v879, %v647
  %v881 = vadd.f32 %v880, %v650
  %v882 = vadd.f32 %v881, %v655
  %v883 = vadd.f32 %v882, %v658
  %v884 = vadd.f32 %v883, %v663
  %v885 = vadd.f32 %v884, %v666
  %v886 = vadd.f32 %v885, %v671
  %v887 = vadd.f32 %v886, %v674
  %v888 = vadd.f32 %v887, %v679
  %v889 = vadd.f32 %v888, %v682
  %v890 = vadd.f32 %v889, %v687
  %v891 = vadd.f32 %v890, %v690
  %v892 = vadd.f32 %v891, %v695
  %v893 = vadd.f32 %v892, %v698
  %v894 = vadd.f32 %v893, %v703
  %v895 = vadd.f32 %v894, %v706
  %v896 = vadd.f32 %v895, %v711
  %v897 = vadd.f32 %v896, %v714
  %v898 = vadd.f32 %v897, %v719
  %v899 = vadd.f32 %v898, %v722
  %v900 = vadd.f32 %v899, %v727
  %v901 = vadd.f32 %v900, %v730
  %v902 = vadd.f32 %v901, %v735
  %v903 = vadd.f32 %v902, %v738
  %v904 = vadd.f32 %v903, %v743
  %v905 = vrot.slane %v904, 4
  %v906 = vadd.f32 %v904, %v905
  %v907 = vrot.slane %v906, 2
  %v908 = vadd.f32 %v906, %v907
  %v909 = vrot.slane %v908, 1
  %v910 = vadd.f32 %v908, %v909
  %v911 = vmul.f32 %v431, %v431
  %v912 = vmul.f32 %v434, %v434
  %v913 = vmul.f32 %v439, %v439
  %v914 = vmul.f32 %v442, %v442
  %v915 = vmul.f32 %v447, %v447
  %v916 = vmul.f32 %v450, %v450
  %v917 = vmul.f32 %v455, %v455
  %v918 = vmul.f32 %v458, %v458
  %v919 = vmul.f32 %v463, %v463
  %v920 = vmul.f32 %v466, %v466
  %v921 = vmul.f32 %v471, %v471
  %v922 = vmul.f32 %v474, %v474
  %v923 = vmul.f32 %v479, %v479
  %v924 = vmul.f32 %v482, %v482
  %v925 = vmul.f32 %v487, %v487
  %v926 = vmul.f32 %v490, %v490
  %v927 = vmul.f32 %v495, %v495
  %v928 = vmul.f32 %v498, %v498
  %v929 = vmul.f32 %v503, %v503
  %v930 = vmul.f32 %v506, %v506
  %v931 = vmul.f32 %v511, %v511
  %v932 = vmul.f32 %v514, %v514
  %v933 = vmul.f32 %v519, %v519
  %v934 = vmul.f32 %v522, %v522
  %v935 = vmul.f32 %v527, %v527
  %v936 = vmul.f32 %v530, %v530
  %v937 = vmul.f32 %v535, %v535
  %v938 = vmul.f32 %v538, %v538
  %v939 = vmul.f32 %v543, %v543
  %v940 = vmul.f32 %v546, %v546
  %v941 = vmul.f32 %v551, %v551
  %v942 = vmul.f32 %v554, %v554
  %v943 = vmul.f32 %v559, %v559
  %v944 = vmul.f32 %v562, %v562
  %v945 = vmul.f32 %v567, %v567
  %v946 = vmul.f32 %v570, %v570
  %v947 = vmul.f32 %v575, %v575
  %v948 = vmul.f32 %v578, %v578
  %v949 = vmul.f32 %v583, %v583
  %v950 = vmul.f32 %v586, %v586
  %v951 = vmul.f32 %v591, %v591
  %v952 = vmul.f32 %v594, %v594
  %v953 = vmul.f32 %v599, %v599
  %v954 = vmul.f32 %v602, %v602
  %v955 = vmul.f32 %v607, %v607
  %v956 = vmul.f32 %v610, %v610
  %v957 = vmul.f32 %v615, %v615
  %v958 = vmul.f32 %v618, %v618
  %v959 = vmul.f32 %v623, %v623
  %v960 = vmul.f32 %v626, %v626
  %v961 = vmul.f32 %v631, %v631
  %v962 = vmul.f32 %v634, %v634
  %v963 = vmul.f32 %v639, %v639
  %v964 = vmul.f32 %v642, %v642
  %v965 = vmul.f32 %v647, %v647
  %v966 = vmul.f32 %v650, %v650
  %v967 = vmul.f32 %v655, %v655
  %v968 = vmul.f32 %v658, %v658
  %v969 = vmul.f32 %v663, %v663
  %v970 = vmul.f32 %v666, %v666
  %v971 = vmul.f32 %v671, %v671
  %v972 = vmul.f32 %v674, %v674
  %v973 = vmul.f32 %v679, %v679
  %v974 = vmul.f32 %v682, %v682
  %v975 = vmul.f32 %v687, %v687
  %v976 = vmul.f32 %v690, %v690
  %v977 = vmul.f32 %v695, %v695
  %v978 = vmul.f32 %v698, %v698
  %v979 = vmul.f32 %v703, %v703
  %v980 = vmul.f32 %v706, %v706
  %v981 = vmul.f32 %v711, %v711
  %v982 = vmul.f32 %v714, %v714
  %v983 = vmul.f32 %v719, %v719
  %v984 = vmul.f32 %v722, %v722
  %v985 = vmul.f32 %v727, %v727
  %v986 = vmul.f32 %v730, %v730
  %v987 = vmul.f32 %v735, %v735
  %v988 = vmul.f32 %v738, %v738
  %v989 = vmul.f32 %v743, %v743
  %v990 = vadd.f32 %v911, %v912
  %v991 = vadd.f32 %v990, %v913
  %v992 = vadd.f32 %v991, %v914
  %v993 = vadd.f32 %v992, %v915
  %v994 = vadd.f32 %v993, %v916
  %v995 = vadd.f32 %v994, %v917
  %v996 = vadd.f32 %v995, %v918
  %v997 = vadd.f32 %v996, %v919
  %v998 = vadd.f32 %v997, %v920
  %v999 = vadd.f32 %v998, %v921
  %v1000 = vadd.f32 %v999, %v922
  %v1001 = vadd.f32 %v1000, %v923
  %v1002 = vadd.f32 %v1001, %v924
  %v1003 = vadd.f32 %v1002, %v925
  %v1004 = vadd.f32 %v1003, %v926
  %v1005 = vadd.f32 %v1004, %v927
  %v1006 = vadd.f32 %v1005, %v928
  %v1007 = vadd.f32 %v1006, %v929
  %v1008 = vadd.f32 %v1007, %v930
  %v1009 = vadd.f32 %v1008, %v931
  %v1010 = vadd.f32 %v1009, %v932
  %v1011 = vadd.f32 %v1010, %v933
  %v1012 = vadd.f32 %v1011, %v934
  %v1013 = vadd.f32 %v1012, %v935
  %v1014 = vadd.f32 %v1013, %v936
  %v1015 = vadd.f32 %v1014, %v937
  %v1016 = vadd.f32 %v1015, %v938
  %v1017 = vadd.f32 %v1016, %v939
  %v1018 = vadd.f32 %v1017, %v940
  %v1019 = vadd.f32 %v1018, %v941
  %v1020 = vadd.f32 %v1019, %v942
  %v1021 = vadd.f32 %v1020, %v943
  %v1022 = vadd.f32 %v1021, %v944
  %v1023 = vadd.f32 %v1022, %v945
  %v1024 = vadd.f32 %v1023, %v946
  %v1025 = vadd.f32 %v1024, %v947
  %v1026 = vadd.f32 %v1025, %v948
  %v1027 = vadd.f32 %v1026, %v949
  %v1028 = vadd.f32 %v1027, %v950
  %v1029 = vadd.f32 %v1028, %v951
  %v1030 = vadd.f32 %v1029, %v952
  %v1031 = vadd.f32 %v1030, %v953
  %v1032 = vadd.f32 %v1031, %v954
  %v1033 = vadd.f32 %v1032, %v955
  %v1034 = vadd.f32 %v1033, %v956
  %v1035 = vadd.f32 %v1034, %v957
  %v1036 = vadd.f32 %v1035, %v958
  %v1037 = vadd.f32 %v1036, %v959
  %v1038 = vadd.f32 %v1037, %v960
  %v1039 = vadd.f32 %v1038, %v961
  %v1040 = vadd.f32 %v1039, %v962
  %v1041 = vadd.f32 %v1040, %v963
  %v1042 = vadd.f32 %v1041, %v964
  %v1043 = vadd.f32 %v1042, %v965
  %v1044 = vadd.f32 %v1043, %v966
  %v1045 = vadd.f32 %v1044, %v967
  %v1046 = vadd.f32 %v1045, %v968
  %v1047 = vadd.f32 %v1046, %v969
  %v1048 = vadd.f32 %v1047, %v970
  %v1049 = vadd.f32 %v1048, %v971
  %v1050 = vadd.f32 %v1049, %v972
  %v1051 = vadd.f32 %v1050, %v973
  %v1052 = vadd.f32 %v1051, %v974
  %v1053 = vadd.f32 %v1052, %v975
  %v1054 = vadd.f32 %v1053, %v976
  %v1055 = vadd.f32 %v1054, %v977
  %v1056 = vadd.f32 %v1055, %v978
  %v1057 = vadd.f32 %v1056, %v979
  %v1058 = vadd.f32 %v1057, %v980
  %v1059 = vadd.f32 %v1058, %v981
  %v1060 = vadd.f32 %v1059, %v982
  %v1061 = vadd.f32 %v1060, %v983
  %v1062 = vadd.f32 %v1061, %v984
  %v1063 = vadd.f32 %v1062, %v985
  %v1064 = vadd.f32 %v1063, %v986
  %v1065 = vadd.f32 %v1064, %v987
  %v1066 = vadd.f32 %v1065, %v988
  %v1067 = vadd.f32 %v1066, %v989
  %v1068 = vrot.slane %v1067, 4
  %v1069 = vadd.f32 %v1067, %v1068
  %v1070 = vrot.slane %v1069, 2
  %v1071 = vadd.f32 %v1069, %v1070
  %v1072 = vrot.slane %v1071, 1
  %v1073 = vadd.f32 %v1071, %v1072
  %1074 = vst [vmem:[%s3] sm:$0xff] %v910
  %1075 = vst [vmem:[%s4] sm:$0xff] %v1073
  // Predicated region
  $region10: #{_lambda_.2} parent=0 // pred_check
    _
  $region11: #{_lambda_.2} parent=0 // pred_check_branch
    %1077 = sbr.rel (0) target = $region13
  $region12: #{_lambda_.2} parent=0 // pred_region
    _
  $region13: #{_lambda_.2} parent=0 // pred_fallthru
    _
  // Predicated region
  $region14: #{_lambda_.2} parent=0 // pred_check
    _
  $region15: #{_lambda_.2} parent=0 // pred_check_branch
    %1079 = sbr.rel (0) target = $region17
  $region16: #{_lambda_.2} parent=0 // pred_region
    _
  $region17: #{_lambda_.2} parent=0 // pred_fallthru
    _
  // Predicated region
  $region18: #{_lambda_.2} parent=0 // pred_check
    _
  $region19: #{_lambda_.2} parent=0 // pred_check_branch
    %1081 = sbr.rel (0) target = $region21
  $region20: #{_lambda_.2} parent=0 // pred_region
    _
  $region21: #{_lambda_.2} parent=0 // pred_fallthru
    _
  // Predicated region
  $region22: #{_lambda_.2} parent=0 // pred_check
    _
  $region23: #{_lambda_.2} parent=0 // pred_check_branch
    %1083 = sbr.rel (0) target = $region25
  $region24: #{_lambda_.2} parent=0 // pred_region
    _
  $region25: #{_lambda_.2} parent=0 // pred_fallthru
    _
  // Predicated region
  $region26: #{_lambda_.2} parent=0 // pred_check
    _
  $region27: #{_lambda_.2} parent=0 // pred_check_branch
    %1085 = sbr.rel (0) target = $region29
  $region28: #{_lambda_.2} parent=0 // pred_region
    _
  $region29: #{_lambda_.2} parent=0 // pred_fallthru
    _
  // Predicated region
  $region30: #{_lambda_.2} parent=0 // pred_check
    _
  $region31: #{_lambda_.2} parent=0 // pred_check_branch
    %1087 = sbr.rel (0) target = $region33
  $region32: #{_lambda_.2} parent=0 // pred_region
    _
  $region33: #{_lambda_.2} parent=0 // pred_fallthru
    _

</llo_original>
